<compile_context>
chip_gen: v5e
topology: v5e:2x2
jax: 0.10.0
libtpu: 0.0.40
codegen_flags: <defaults>
</compile_context>

<pallas_src>
import math
import functools

import numpy as np
import jax
import jax.numpy as jnp
from jax import lax
from jax.experimental import pallas as pl
from jax.experimental.pallas import tpu as pltpu

# hyptorch pmath numerical constants
_MIN_NORM = 1e-5      # clamp_min on L2 norms
_TANH_CLAMP = 15.0    # tanh argument clamp
_ATANH_EPS = 1e-5     # artanh argument clamp
_PROJ_EPS = 1e-3      # project() boundary epsilon
_ADD_EPS = 1e-5       # mobius_add denominator epsilon

_LANE = 128


def _round_up(x, m):
    return (x + m - 1) // m * m


def _artanh(x):
    x = jnp.clip(x, -1.0 + _ATANH_EPS, 1.0 - _ATANH_EPS)
    return 0.5 * (jnp.log1p(x) - jnp.log1p(-x))


def _tanh(x):
    return jnp.tanh(jnp.clip(x, -_TANH_CLAMP, _TANH_CLAMP))


def _hyp_conv_kernel(x_ref, w_ref, b_ref, m_ref, o_ref, xs_ref, *,
                     c, K, Wp, L_out, S_valid, has_bias):
    f32 = jnp.float32
    sqrt_c = jnp.float32(math.sqrt(c))
    cf = jnp.float32(c)

    x = x_ref[0].astype(f32)          # (Cin, Lp)  zero-padded, spatially flattened image
    mask = m_ref[...].astype(f32)     # (1, L_out) 1.0 on real output pixels, 0.0 on halo

    # ---- logmap0 per input channel (zero padding adds nothing to the norm) ----
    xn = jnp.maximum(jnp.sqrt(jnp.sum(x * x, axis=-1, keepdims=True)), _MIN_NORM)   # (Cin,1)
    log_scale = _artanh(sqrt_c * xn) * pl.reciprocal(sqrt_c * xn, approx=True)       # (Cin,1)
    xs_ref[...] = (x * log_scale).astype(xs_ref.dtype)        # bf16 staging for the MXU

    # ---- conv2d as K*K lane-shifted MXU matmuls, f32 accumulation ----
    acc = jnp.zeros(o_ref.shape[1:], f32)                     # (Cout, L_out)
    for kh in range(K):
        for kw in range(K):
            kk = kh * K + kw
            off = kh * Wp + kw                                # static lane offset
            acc += jnp.dot(w_ref[kk], xs_ref[:, pl.ds(off, L_out)],
                           preferred_element_type=f32)
    mx = acc * mask                                           # zero the wrap-around halo

    # ---- expmap0 per output channel row ----
    mn = jnp.maximum(jnp.sqrt(jnp.sum(mx * mx, axis=-1, keepdims=True)), _MIN_NORM)  # (Cout,1)
    exp_scale = _tanh(sqrt_c * mn) * pl.reciprocal(sqrt_c * mn, approx=True)
    oe = mx * exp_scale                                       # (Cout, L_out)

    if has_bias:
        # expmap0 of the (Cout,) bias vector (norm over the channel axis)
        b = b_ref[...].astype(f32)                            # (Cout, 1)
        bn = jnp.maximum(jnp.sqrt(jnp.sum(b * b)), _MIN_NORM)  # scalar
        be = _tanh(sqrt_c * bn) / (sqrt_c * bn) * b           # (Cout, 1)

        # mobius_add(oe_row, be[cout] broadcast over the S_valid real pixels).
        # All reductions / divides are (Cout,1)-shaped (hoisted off the wide tile).
        x2 = jnp.sum(oe * oe, axis=-1, keepdims=True)         # (Cout,1)
        xy = be * jnp.sum(oe, axis=-1, keepdims=True)         # (Cout,1)
        y2 = jnp.float32(S_valid) * be * be                   # (Cout,1)  analytic: S*be^2
        coef_x = 1.0 + 2.0 * cf * xy + cf * y2                # (Cout,1)
        coef_y = (1.0 - cf * x2) * be                         # (Cout,1)
        num = coef_x * oe + coef_y * mask                     # masked bias broadcast
        den = 1.0 + 2.0 * cf * xy + cf * cf * x2 * y2         # (Cout,1)
        res = num * (1.0 / (den + _ADD_EPS))                  # exact reciprocal (cheap)
    else:
        res = oe

    # ---- project ----
    rn = jnp.maximum(jnp.sqrt(jnp.sum(res * res, axis=-1, keepdims=True)), _MIN_NORM)
    maxnorm = (1.0 - _PROJ_EPS) / sqrt_c
    factor = jnp.where(rn > maxnorm, maxnorm / rn, 1.0)       # (Cout,1), exact divide
    o_ref[0] = (res * factor).astype(o_ref.dtype)


def prepare_hyp_conv_weight(weight, mxu_dtype=jnp.bfloat16):
    """(Cout, Cin, K, K) PyTorch weight -> (K*K, Cout, Cin) MXU-ready.  Call ONCE."""
    Cout, Cin, K, _ = weight.shape
    return jnp.transpose(weight, (2, 3, 0, 1)).reshape(K * K, Cout, Cin).astype(mxu_dtype)


def hyp_conv(x, w_prep, bias, c, *, ker_size, padding=0):
    """x: (B, Cin, H, W) f32; w_prep: (K*K, Cout, Cin) from prepare_hyp_conv_weight;
    bias: (Cout,) f32 or None."""
    B, Cin, H, W = x.shape
    KK, Cout, _ = w_prep.shape
    K, P = ker_size, padding
    Hp, Wp = H + 2 * P, W + 2 * P
    Ho, Wo = Hp - K + 1, Wp - K + 1
    S_valid = Ho * Wo

    L_out = _round_up(Ho * Wp, _LANE)                    # lane-dense output rows
    Lp = _round_up((K - 1) * (Wp + 1) + L_out, _LANE)    # flattened padded input rows

    # Zero-pad + flatten the spatial dims (pure data movement; the kernel reads this
    # once per image and everything else stays on-chip).
    xpf = jnp.pad(x, ((0, 0), (0, 0), (P, P), (P, P))).reshape(B, Cin, Hp * Wp)
    xpf = jnp.pad(xpf, ((0, 0), (0, 0), (0, Lp - Hp * Wp)))

    # Static validity mask for the padded output layout.
    col = np.arange(L_out)
    mask = ((col < Ho * Wp) & ((col % Wp) < Wo)).astype(np.float32)[None, :]
    mask = jnp.asarray(mask)

    has_bias = bias is not None
    b2 = (bias if has_bias else jnp.zeros((Cout,), jnp.float32)).astype(jnp.float32)
    b2 = b2.reshape(Cout, 1)

    kernel = functools.partial(
        _hyp_conv_kernel, c=float(c), K=K, Wp=Wp, L_out=L_out,
        S_valid=S_valid, has_bias=has_bias)

    flops = 2 * B * Cout * Cin * K * K * L_out
    bytes_accessed = (xpf.size * 4 + w_prep.size * w_prep.dtype.itemsize
                      + mask.size * 4 + b2.size * 4 + B * Cout * L_out * 4)
    cost = pl.CostEstimate(flops=flops,
                           transcendentals=3 * B * (Cin + 2 * Cout),
                           bytes_accessed=bytes_accessed)

    out = pl.pallas_call(
        kernel,
        out_shape=jax.ShapeDtypeStruct((B, Cout, L_out), x.dtype),
        grid=(B,),
        in_specs=[
            pl.BlockSpec((1, Cin, Lp), lambda b: (b, 0, 0)),       # image tile (pipelined)
            pl.BlockSpec((KK, Cout, Cin), lambda b: (0, 0, 0)),    # resident bf16 weight
            pl.BlockSpec((Cout, 1), lambda b: (0, 0)),             # resident bias
            pl.BlockSpec((1, L_out), lambda b: (0, 0)),            # resident mask
        ],
        out_specs=pl.BlockSpec((1, Cout, L_out), lambda b: (b, 0, 0)),
        scratch_shapes=[pltpu.VMEM((Cin, Lp), w_prep.dtype)],      # bf16 scaled image
        compiler_params=pltpu.CompilerParams(
            dimension_semantics=("parallel",),
            vmem_limit_bytes=32 * 1024 * 1024),
        cost_estimate=cost,
    )(xpf, w_prep, b2, mask)

    # Strip halo / lane padding: (B, Cout, L_out) -> (B, Cout, Ho, Wo)
    return out[:, :, :Ho * Wp].reshape(B, Cout, Ho, Wp)[:, :, :, :Wo]


# ---------------- pure-JAX f32 reference (faithful to the PyTorch module) ----------------
def hyp_conv_ref(x, weight, bias, c, padding):
    B, Cin, H, W = x.shape
    Cout = weight.shape[0]
    sqrt_c = math.sqrt(c)

    xf = x.reshape(B * Cin, H * W)
    xn = jnp.maximum(jnp.sqrt(jnp.sum(xf * xf, -1, keepdims=True)), _MIN_NORM)
    x_log = (_artanh(sqrt_c * xn) / (sqrt_c * xn) * xf).reshape(B, Cin, H, W)

    out = lax.conv_general_dilated(
        x_log, weight, window_strides=(1, 1),
        padding=[(padding, padding), (padding, padding)],
        dimension_numbers=("NCHW", "OIHW", "NCHW"))
    _, _, Ho, Wo = out.shape

    of = out.reshape(B * Cout, Ho * Wo)
    on = jnp.maximum(jnp.sqrt(jnp.sum(of * of, -1, keepdims=True)), _MIN_NORM)
    oe = _tanh(sqrt_c * on) / (sqrt_c * on) * of

    if bias is not None:
        bn = jnp.maximum(jnp.sqrt(jnp.sum(bias * bias)), _MIN_NORM)
        be = _tanh(sqrt_c * bn) / (sqrt_c * bn) * bias
        brow = jnp.broadcast_to(be[None, :, None], (B, Cout, Ho * Wo)).reshape(B * Cout, Ho * Wo)
        x2 = jnp.sum(oe * oe, -1, keepdims=True)
        y2 = jnp.sum(brow * brow, -1, keepdims=True)
        xy = jnp.sum(oe * brow, -1, keepdims=True)
        num = (1 + 2 * c * xy + c * y2) * oe + (1 - c * x2) * brow
        den = 1 + 2 * c * xy + c * c * x2 * y2
        res = num / (den + _ADD_EPS)
    else:
        res = oe

    rn = jnp.maximum(jnp.sqrt(jnp.sum(res * res, -1, keepdims=True)), _MIN_NORM)
    maxnorm = (1 - _PROJ_EPS) / sqrt_c
    res = jnp.where(rn > maxnorm, res / rn * maxnorm, res)
    return res.reshape(B, Cout, Ho, Wo)


if __name__ == "__main__":
    key = jax.random.PRNGKey(0)
    k_x, k_w, k_b = jax.random.split(key, 3)

    B, Cin, Cout, H, W = 2, 4, 8, 16, 16
    K, P, c = 3, 1, 1.0

    # Deterministic init mirroring the module: bias ~ U(-1/sqrt(fan_in), 1/sqrt(fan_in)).
    fan_in = Cin * K * K
    bound = 1.0 / math.sqrt(fan_in)
    weight = jax.random.uniform(k_w, (Cout, Cin, K, K), jnp.float32, -bound, bound)
    bias = jax.random.uniform(k_b, (Cout,), jnp.float32, -bound, bound)

    # Inputs well inside the Poincare ball (per-(b,channel) spatial norm < 1).
    x = 0.03 * jax.random.normal(k_x, (B, Cin, H, W), jnp.float32)

    w_prep = prepare_hyp_conv_weight(weight)      # one-time weight rearrangement / bf16 cast
    out = hyp_conv(x, w_prep, bias, c, ker_size=K, padding=P)
    out = jax.block_until_ready(out)

    ref = hyp_conv_ref(x, weight, bias, c, P)
    assert out.shape == (B, Cout, H, W), out.shape
    err = float(jnp.max(jnp.abs(out - ref)))
    # bf16 MXU operands + EUP approx reciprocals vs a pure-f32 reference.
    assert err < 5e-3, f"max err {err}"
    print("KERNEL_OK")
</pallas_src>

<mosaic_0001>
module attributes {stable_mosaic.version = 11 : i64} {
  func.func @_hyp_conv_kernel(%arg0: i32, %arg1: memref<1x4x512xf32, #tpu.memory_space<vmem>>, %arg2: memref<9x8x4xbf16, #tpu.memory_space<vmem>>, %arg3: memref<8x1xf32, #tpu.memory_space<vmem>>, %arg4: memref<1x384xf32, #tpu.memory_space<vmem>>, %arg5: memref<1x8x384xf32, #tpu.memory_space<vmem>>, %arg6: memref<4x512xbf16, #tpu.memory_space<vmem>>) attributes {dimension_semantics = [#tpu.dimension_semantics<parallel>], iteration_bounds = array<i64: 2>, scalar_prefetch = 0 : i64, scratch_operands = 1 : i64, tpu.core_type = #tpu.core_type<tc>, window_params = [{transform_indices = @transform_0, window_bounds = array<i64: 1, 4, 512>}, {pipeline_mode = #tpu.pipeline_mode<synchronous>, transform_indices = @transform_1, window_bounds = array<i64: 9, 8, 4>}, {pipeline_mode = #tpu.pipeline_mode<synchronous>, transform_indices = @transform_2, window_bounds = array<i64: 8, 1>}, {pipeline_mode = #tpu.pipeline_mode<synchronous>, transform_indices = @transform_3, window_bounds = array<i64: 1, 384>}, {transform_indices = @transform_4, window_bounds = array<i64: 1, 8, 384>}]} {
    %c0 = arith.constant 0 : index
    %c0_0 = arith.constant 0 : index
    %c0_1 = arith.constant 0 : index
    %0 = vector.load %arg1[%c0, %c0_0, %c0_1] : memref<1x4x512xf32, #tpu.memory_space<vmem>>, vector<1x4x512xf32>
    %1 = vector.shape_cast %0 : vector<1x4x512xf32> to vector<4x512xf32>
    %c0_2 = arith.constant 0 : index
    %c0_3 = arith.constant 0 : index
    %2 = vector.load %arg4[%c0_2, %c0_3] : memref<1x384xf32, #tpu.memory_space<vmem>>, vector<1x384xf32>
    %3 = arith.mulf %1, %1 : vector<4x512xf32>
    %cst = arith.constant dense<0.000000e+00> : vector<4xf32>
    %4 = vector.multi_reduction <add>, %3, %cst [1] : vector<4x512xf32> to vector<4xf32>
    %5 = vector.shape_cast %4 : vector<4xf32> to vector<4x1xf32>
    %6 = math.sqrt %5 : vector<4x1xf32>
    %cst_4 = arith.constant 9.99999974E-6 : f32
    %7 = vector.broadcast %cst_4 : f32 to vector<4x1xf32>
    %8 = arith.maximumf %6, %7 : vector<4x1xf32>
    %cst_5 = arith.constant 1.000000e+00 : f32
    %9 = vector.broadcast %cst_5 : f32 to vector<4x1xf32>
    %10 = arith.mulf %9, %8 : vector<4x1xf32>
    %cst_6 = arith.constant -0.999989986 : f32
    %cst_7 = arith.constant 0.999989986 : f32
    %11 = vector.broadcast %cst_6 : f32 to vector<4x1xf32>
    %12 = arith.maximumf %11, %10 : vector<4x1xf32>
    %13 = vector.broadcast %cst_7 : f32 to vector<4x1xf32>
    %14 = arith.minimumf %13, %12 : vector<4x1xf32>
    %15 = math.log1p %14 : vector<4x1xf32>
    %cst_8 = arith.constant 0.000000e+00 : f32
    %16 = vector.broadcast %cst_8 : f32 to vector<4x1xf32>
    %17 = arith.subf %16, %14 : vector<4x1xf32>
    %18 = math.log1p %17 : vector<4x1xf32>
    %19 = arith.subf %15, %18 : vector<4x1xf32>
    %cst_9 = arith.constant 5.000000e-01 : f32
    %20 = vector.broadcast %cst_9 : f32 to vector<4x1xf32>
    %21 = arith.mulf %20, %19 : vector<4x1xf32>
    %cst_10 = arith.constant 1.000000e+00 : f32
    %22 = vector.broadcast %cst_10 : f32 to vector<4x1xf32>
    %23 = arith.mulf %22, %8 : vector<4x1xf32>
    %24 = tpu.reciprocal %23 {approx = true} : vector<4x1xf32> -> vector<4x1xf32>
    %25 = arith.mulf %21, %24 : vector<4x1xf32>
    %26 = vector.broadcast %25 : vector<4x1xf32> to vector<4x512xf32>
    %27 = arith.mulf %1, %26 : vector<4x512xf32>
    %28 = arith.truncf %27 : vector<4x512xf32> to vector<4x512xbf16>
    %c0_11 = arith.constant 0 : index
    %c0_12 = arith.constant 0 : index
    %29 = vector.load %arg6[%c0_11, %c0_12] : memref<4x512xbf16, #tpu.memory_space<vmem>>, vector<4x512xbf16>
    tpu.vector_store %arg6[%c0_11, %c0_12], %28 {strides = array<i32>} : memref<4x512xbf16, #tpu.memory_space<vmem>>, vector<4x512xbf16>,
    %cst_13 = arith.constant 0.000000e+00 : f32
    %30 = vector.broadcast %cst_13 : f32 to vector<8x384xf32>
    %c0_14 = arith.constant 0 : index
    %c0_15 = arith.constant 0 : index
    %c0_16 = arith.constant 0 : index
    %31 = vector.load %arg2[%c0_14, %c0_15, %c0_16] : memref<9x8x4xbf16, #tpu.memory_space<vmem>>, vector<1x8x4xbf16>
    %32 = vector.shape_cast %31 : vector<1x8x4xbf16> to vector<8x4xbf16>
    %c0_17 = arith.constant 0 : index
    %c0_18 = arith.constant 0 : index
    %33 = vector.load %arg6[%c0_17, %c0_18] : memref<4x512xbf16, #tpu.memory_space<vmem>>, vector<4x384xbf16>
    %cst_19 = arith.constant dense<0.000000e+00> : vector<8x384xf32>
    %34 = tpu.matmul %32, %33, %cst_19 {dimension_numbers = #tpu.dot_dimension_numbers<[1], [0], [0], [1], [0, 0, 1, 1], [], []>} : vector<8x4xbf16>, vector<4x384xbf16>, vector<8x384xf32> -> vector<8x384xf32>
    %35 = arith.addf %30, %34 : vector<8x384xf32>
    %c1 = arith.constant 1 : index
    %c0_20 = arith.constant 0 : index
    %c0_21 = arith.constant 0 : index
    %36 = vector.load %arg2[%c1, %c0_20, %c0_21] : memref<9x8x4xbf16, #tpu.memory_space<vmem>>, vector<1x8x4xbf16>
    %37 = vector.shape_cast %36 : vector<1x8x4xbf16> to vector<8x4xbf16>
    %c0_22 = arith.constant 0 : index
    %c1_23 = arith.constant 1 : index
    %38 = vector.load %arg6[%c0_22, %c1_23] : memref<4x512xbf16, #tpu.memory_space<vmem>>, vector<4x384xbf16>
    %cst_24 = arith.constant dense<0.000000e+00> : vector<8x384xf32>
    %39 = tpu.matmul %37, %38, %cst_24 {dimension_numbers = #tpu.dot_dimension_numbers<[1], [0], [0], [1], [0, 0, 1, 1], [], []>} : vector<8x4xbf16>, vector<4x384xbf16>, vector<8x384xf32> -> vector<8x384xf32>
    %40 = arith.addf %35, %39 : vector<8x384xf32>
    %c2 = arith.constant 2 : index
    %c0_25 = arith.constant 0 : index
    %c0_26 = arith.constant 0 : index
    %41 = vector.load %arg2[%c2, %c0_25, %c0_26] : memref<9x8x4xbf16, #tpu.memory_space<vmem>>, vector<1x8x4xbf16>
    %42 = vector.shape_cast %41 : vector<1x8x4xbf16> to vector<8x4xbf16>
    %c0_27 = arith.constant 0 : index
    %c2_28 = arith.constant 2 : index
    %43 = vector.load %arg6[%c0_27, %c2_28] : memref<4x512xbf16, #tpu.memory_space<vmem>>, vector<4x384xbf16>
    %cst_29 = arith.constant dense<0.000000e+00> : vector<8x384xf32>
    %44 = tpu.matmul %42, %43, %cst_29 {dimension_numbers = #tpu.dot_dimension_numbers<[1], [0], [0], [1], [0, 0, 1, 1], [], []>} : vector<8x4xbf16>, vector<4x384xbf16>, vector<8x384xf32> -> vector<8x384xf32>
    %45 = arith.addf %40, %44 : vector<8x384xf32>
    %c3 = arith.constant 3 : index
    %c0_30 = arith.constant 0 : index
    %c0_31 = arith.constant 0 : index
    %46 = vector.load %arg2[%c3, %c0_30, %c0_31] : memref<9x8x4xbf16, #tpu.memory_space<vmem>>, vector<1x8x4xbf16>
    %47 = vector.shape_cast %46 : vector<1x8x4xbf16> to vector<8x4xbf16>
    %c0_32 = arith.constant 0 : index
    %c18 = arith.constant 18 : index
    %48 = vector.load %arg6[%c0_32, %c18] : memref<4x512xbf16, #tpu.memory_space<vmem>>, vector<4x384xbf16>
    %cst_33 = arith.constant dense<0.000000e+00> : vector<8x384xf32>
    %49 = tpu.matmul %47, %48, %cst_33 {dimension_numbers = #tpu.dot_dimension_numbers<[1], [0], [0], [1], [0, 0, 1, 1], [], []>} : vector<8x4xbf16>, vector<4x384xbf16>, vector<8x384xf32> -> vector<8x384xf32>
    %50 = arith.addf %45, %49 : vector<8x384xf32>
    %c4 = arith.constant 4 : index
    %c0_34 = arith.constant 0 : index
    %c0_35 = arith.constant 0 : index
    %51 = vector.load %arg2[%c4, %c0_34, %c0_35] : memref<9x8x4xbf16, #tpu.memory_space<vmem>>, vector<1x8x4xbf16>
    %52 = vector.shape_cast %51 : vector<1x8x4xbf16> to vector<8x4xbf16>
    %c0_36 = arith.constant 0 : index
    %c19 = arith.constant 19 : index
    %53 = vector.load %arg6[%c0_36, %c19] : memref<4x512xbf16, #tpu.memory_space<vmem>>, vector<4x384xbf16>
    %cst_37 = arith.constant dense<0.000000e+00> : vector<8x384xf32>
    %54 = tpu.matmul %52, %53, %cst_37 {dimension_numbers = #tpu.dot_dimension_numbers<[1], [0], [0], [1], [0, 0, 1, 1], [], []>} : vector<8x4xbf16>, vector<4x384xbf16>, vector<8x384xf32> -> vector<8x384xf32>
    %55 = arith.addf %50, %54 : vector<8x384xf32>
    %c5 = arith.constant 5 : index
    %c0_38 = arith.constant 0 : index
    %c0_39 = arith.constant 0 : index
    %56 = vector.load %arg2[%c5, %c0_38, %c0_39] : memref<9x8x4xbf16, #tpu.memory_space<vmem>>, vector<1x8x4xbf16>
    %57 = vector.shape_cast %56 : vector<1x8x4xbf16> to vector<8x4xbf16>
    %c0_40 = arith.constant 0 : index
    %c20 = arith.constant 20 : index
    %58 = vector.load %arg6[%c0_40, %c20] : memref<4x512xbf16, #tpu.memory_space<vmem>>, vector<4x384xbf16>
    %cst_41 = arith.constant dense<0.000000e+00> : vector<8x384xf32>
    %59 = tpu.matmul %57, %58, %cst_41 {dimension_numbers = #tpu.dot_dimension_numbers<[1], [0], [0], [1], [0, 0, 1, 1], [], []>} : vector<8x4xbf16>, vector<4x384xbf16>, vector<8x384xf32> -> vector<8x384xf32>
    %60 = arith.addf %55, %59 : vector<8x384xf32>
    %c6 = arith.constant 6 : index
    %c0_42 = arith.constant 0 : index
    %c0_43 = arith.constant 0 : index
    %61 = vector.load %arg2[%c6, %c0_42, %c0_43] : memref<9x8x4xbf16, #tpu.memory_space<vmem>>, vector<1x8x4xbf16>
    %62 = vector.shape_cast %61 : vector<1x8x4xbf16> to vector<8x4xbf16>
    %c0_44 = arith.constant 0 : index
    %c36 = arith.constant 36 : index
    %63 = vector.load %arg6[%c0_44, %c36] : memref<4x512xbf16, #tpu.memory_space<vmem>>, vector<4x384xbf16>
    %cst_45 = arith.constant dense<0.000000e+00> : vector<8x384xf32>
    %64 = tpu.matmul %62, %63, %cst_45 {dimension_numbers = #tpu.dot_dimension_numbers<[1], [0], [0], [1], [0, 0, 1, 1], [], []>} : vector<8x4xbf16>, vector<4x384xbf16>, vector<8x384xf32> -> vector<8x384xf32>
    %65 = arith.addf %60, %64 : vector<8x384xf32>
    %c7 = arith.constant 7 : index
    %c0_46 = arith.constant 0 : index
    %c0_47 = arith.constant 0 : index
    %66 = vector.load %arg2[%c7, %c0_46, %c0_47] : memref<9x8x4xbf16, #tpu.memory_space<vmem>>, vector<1x8x4xbf16>
    %67 = vector.shape_cast %66 : vector<1x8x4xbf16> to vector<8x4xbf16>
    %c0_48 = arith.constant 0 : index
    %c37 = arith.constant 37 : index
    %68 = vector.load %arg6[%c0_48, %c37] : memref<4x512xbf16, #tpu.memory_space<vmem>>, vector<4x384xbf16>
    %cst_49 = arith.constant dense<0.000000e+00> : vector<8x384xf32>
    %69 = tpu.matmul %67, %68, %cst_49 {dimension_numbers = #tpu.dot_dimension_numbers<[1], [0], [0], [1], [0, 0, 1, 1], [], []>} : vector<8x4xbf16>, vector<4x384xbf16>, vector<8x384xf32> -> vector<8x384xf32>
    %70 = arith.addf %65, %69 : vector<8x384xf32>
    %c8 = arith.constant 8 : index
    %c0_50 = arith.constant 0 : index
    %c0_51 = arith.constant 0 : index
    %71 = vector.load %arg2[%c8, %c0_50, %c0_51] : memref<9x8x4xbf16, #tpu.memory_space<vmem>>, vector<1x8x4xbf16>
    %72 = vector.shape_cast %71 : vector<1x8x4xbf16> to vector<8x4xbf16>
    %c0_52 = arith.constant 0 : index
    %c38 = arith.constant 38 : index
    %73 = vector.load %arg6[%c0_52, %c38] : memref<4x512xbf16, #tpu.memory_space<vmem>>, vector<4x384xbf16>
    %cst_53 = arith.constant dense<0.000000e+00> : vector<8x384xf32>
    %74 = tpu.matmul %72, %73, %cst_53 {dimension_numbers = #tpu.dot_dimension_numbers<[1], [0], [0], [1], [0, 0, 1, 1], [], []>} : vector<8x4xbf16>, vector<4x384xbf16>, vector<8x384xf32> -> vector<8x384xf32>
    %75 = arith.addf %70, %74 : vector<8x384xf32>
    %76 = vector.broadcast %2 : vector<1x384xf32> to vector<8x384xf32>
    %77 = arith.mulf %75, %76 : vector<8x384xf32>
    %78 = arith.mulf %77, %77 : vector<8x384xf32>
    %cst_54 = arith.constant dense<0.000000e+00> : vector<8xf32>
    %79 = vector.multi_reduction <add>, %78, %cst_54 [1] : vector<8x384xf32> to vector<8xf32>
    %80 = vector.shape_cast %79 : vector<8xf32> to vector<8x1xf32>
    %81 = math.sqrt %80 : vector<8x1xf32>
    %cst_55 = arith.constant 9.99999974E-6 : f32
    %82 = vector.broadcast %cst_55 : f32 to vector<8x1xf32>
    %83 = arith.maximumf %81, %82 : vector<8x1xf32>
    %cst_56 = arith.constant 1.000000e+00 : f32
    %84 = vector.broadcast %cst_56 : f32 to vector<8x1xf32>
    %85 = arith.mulf %84, %83 : vector<8x1xf32>
    %cst_57 = arith.constant -1.500000e+01 : f32
    %cst_58 = arith.constant 1.500000e+01 : f32
    %86 = vector.broadcast %cst_57 : f32 to vector<8x1xf32>
    %87 = arith.maximumf %86, %85 : vector<8x1xf32>
    %88 = vector.broadcast %cst_58 : f32 to vector<8x1xf32>
    %89 = arith.minimumf %88, %87 : vector<8x1xf32>
    %90 = math.tanh %89 : vector<8x1xf32>
    %cst_59 = arith.constant 1.000000e+00 : f32
    %91 = vector.broadcast %cst_59 : f32 to vector<8x1xf32>
    %92 = arith.mulf %91, %83 : vector<8x1xf32>
    %93 = tpu.reciprocal %92 {approx = true} : vector<8x1xf32> -> vector<8x1xf32>
    %94 = arith.mulf %90, %93 : vector<8x1xf32>
    %95 = vector.broadcast %94 : vector<8x1xf32> to vector<8x384xf32>
    %96 = arith.mulf %77, %95 : vector<8x384xf32>
    %c0_60 = arith.constant 0 : index
    %c0_61 = arith.constant 0 : index
    %97 = vector.load %arg3[%c0_60, %c0_61] : memref<8x1xf32, #tpu.memory_space<vmem>>, vector<8x1xf32>
    %98 = arith.mulf %97, %97 : vector<8x1xf32>
    %99 = vector.shape_cast %98 : vector<8x1xf32> to vector<1x8x1xf32>
    %cst_62 = arith.constant dense<0.000000e+00> : vector<1xf32>
    %100 = vector.multi_reduction <add>, %99, %cst_62 [1, 2] : vector<1x8x1xf32> to vector<1xf32>
    %101 = vector.shape_cast %100 : vector<1xf32> to vector<1x1x1xf32>
    %102 = vector.extract %101[0, 0, 0] : f32 from vector<1x1x1xf32>
    %103 = math.sqrt %102 : f32
    %cst_63 = arith.constant 9.99999974E-6 : f32
    %104 = arith.maximumf %103, %cst_63 : f32
    %cst_64 = arith.constant 1.000000e+00 : f32
    %105 = arith.mulf %cst_64, %104 : f32
    %cst_65 = arith.constant -1.500000e+01 : f32
    %cst_66 = arith.constant 1.500000e+01 : f32
    %106 = arith.maximumf %cst_65, %105 : f32
    %107 = arith.minimumf %cst_66, %106 : f32
    %108 = math.tanh %107 : f32
    %cst_67 = arith.constant 1.000000e+00 : f32
    %109 = arith.mulf %cst_67, %104 : f32
    %110 = arith.divf %108, %109 : f32
    %111 = vector.broadcast %110 : f32 to vector<8x1xf32>
    %112 = arith.mulf %111, %97 : vector<8x1xf32>
    %113 = arith.mulf %96, %96 : vector<8x384xf32>
    %cst_68 = arith.constant dense<0.000000e+00> : vector<8xf32>
    %114 = vector.multi_reduction <add>, %113, %cst_68 [1] : vector<8x384xf32> to vector<8xf32>
    %115 = vector.shape_cast %114 : vector<8xf32> to vector<8x1xf32>
    %cst_69 = arith.constant dense<0.000000e+00> : vector<8xf32>
    %116 = vector.multi_reduction <add>, %96, %cst_69 [1] : vector<8x384xf32> to vector<8xf32>
    %117 = vector.shape_cast %116 : vector<8xf32> to vector<8x1xf32>
    %118 = arith.mulf %112, %117 : vector<8x1xf32>
    %cst_70 = arith.constant 2.560000e+02 : f32
    %119 = vector.broadcast %cst_70 : f32 to vector<8x1xf32>
    %120 = arith.mulf %119, %112 : vector<8x1xf32>
    %121 = arith.mulf %120, %112 : vector<8x1xf32>
    %cst_71 = arith.constant 2.000000e+00 : f32
    %cst_72 = arith.constant 1.000000e+00 : f32
    %122 = arith.mulf %cst_71, %cst_72 : f32
    %123 = vector.broadcast %122 : f32 to vector<8x1xf32>
    %124 = arith.mulf %123, %118 : vector<8x1xf32>
    %cst_73 = arith.constant 1.000000e+00 : f32
    %125 = vector.broadcast %cst_73 : f32 to vector<8x1xf32>
    %126 = arith.addf %125, %124 : vector<8x1xf32>
    %cst_74 = arith.constant 1.000000e+00 : f32
    %127 = vector.broadcast %cst_74 : f32 to vector<8x1xf32>
    %128 = arith.mulf %127, %121 : vector<8x1xf32>
    %129 = arith.addf %126, %128 : vector<8x1xf32>
    %cst_75 = arith.constant 1.000000e+00 : f32
    %130 = vector.broadcast %cst_75 : f32 to vector<8x1xf32>
    %131 = arith.mulf %130, %115 : vector<8x1xf32>
    %cst_76 = arith.constant 1.000000e+00 : f32
    %132 = vector.broadcast %cst_76 : f32 to vector<8x1xf32>
    %133 = arith.subf %132, %131 : vector<8x1xf32>
    %134 = arith.mulf %133, %112 : vector<8x1xf32>
    %135 = vector.broadcast %129 : vector<8x1xf32> to vector<8x384xf32>
    %136 = arith.mulf %135, %96 : vector<8x384xf32>
    %137 = vector.broadcast %134 : vector<8x1xf32> to vector<8x384xf32>
    %138 = vector.broadcast %2 : vector<1x384xf32> to vector<8x384xf32>
    %139 = arith.mulf %137, %138 : vector<8x384xf32>
    %140 = arith.addf %136, %139 : vector<8x384xf32>
    %cst_77 = arith.constant 2.000000e+00 : f32
    %cst_78 = arith.constant 1.000000e+00 : f32
    %141 = arith.mulf %cst_77, %cst_78 : f32
    %142 = vector.broadcast %141 : f32 to vector<8x1xf32>
    %143 = arith.mulf %142, %118 : vector<8x1xf32>
    %cst_79 = arith.constant 1.000000e+00 : f32
    %144 = vector.broadcast %cst_79 : f32 to vector<8x1xf32>
    %145 = arith.addf %144, %143 : vector<8x1xf32>
    %cst_80 = arith.constant 1.000000e+00 : f32
    %cst_81 = arith.constant 1.000000e+00 : f32
    %146 = arith.mulf %cst_80, %cst_81 : f32
    %147 = vector.broadcast %146 : f32 to vector<8x1xf32>
    %148 = arith.mulf %147, %115 : vector<8x1xf32>
    %149 = arith.mulf %148, %121 : vector<8x1xf32>
    %150 = arith.addf %145, %149 : vector<8x1xf32>
    %cst_82 = arith.constant 9.99999974E-6 : f32
    %151 = vector.broadcast %cst_82 : f32 to vector<8x1xf32>
    %152 = arith.addf %150, %151 : vector<8x1xf32>
    %cst_83 = arith.constant 1.000000e+00 : f32
    %153 = vector.broadcast %cst_83 : f32 to vector<8x1xf32>
    %154 = arith.divf %153, %152 : vector<8x1xf32>
    %155 = vector.broadcast %154 : vector<8x1xf32> to vector<8x384xf32>
    %156 = arith.mulf %140, %155 : vector<8x384xf32>
    %157 = arith.mulf %156, %156 : vector<8x384xf32>
    %cst_84 = arith.constant dense<0.000000e+00> : vector<8xf32>
    %158 = vector.multi_reduction <add>, %157, %cst_84 [1] : vector<8x384xf32> to vector<8xf32>
    %159 = vector.shape_cast %158 : vector<8xf32> to vector<8x1xf32>
    %160 = math.sqrt %159 : vector<8x1xf32>
    %cst_85 = arith.constant 9.99999974E-6 : f32
    %161 = vector.broadcast %cst_85 : f32 to vector<8x1xf32>
    %162 = arith.maximumf %160, %161 : vector<8x1xf32>
    %cst_86 = arith.constant 9.990000e-01 : f32
    %cst_87 = arith.constant 1.000000e+00 : f32
    %163 = arith.divf %cst_86, %cst_87 : f32
    %164 = vector.broadcast %163 : f32 to vector<8x1xf32>
    %165 = arith.cmpf ogt, %162, %164 : vector<8x1xf32>
    %166 = vector.broadcast %163 : f32 to vector<8x1xf32>
    %167 = arith.divf %166, %162 : vector<8x1xf32>
    %cst_88 = arith.constant 1.000000e+00 : f32
    %168 = vector.broadcast %cst_88 : f32 to vector<8x1xf32>
    %169 = arith.select %165, %167, %168 : vector<8x1xi1>, vector<8x1xf32>
    %170 = vector.broadcast %169 : vector<8x1xf32> to vector<8x384xf32>
    %171 = arith.mulf %156, %170 : vector<8x384xf32>
    %c0_89 = arith.constant 0 : index
    %c0_90 = arith.constant 0 : index
    %c0_91 = arith.constant 0 : index
    %172 = vector.load %arg5[%c0_89, %c0_90, %c0_91] : memref<1x8x384xf32, #tpu.memory_space<vmem>>, vector<1x8x384xf32>
    %173 = vector.shape_cast %172 : vector<1x8x384xf32> to vector<8x384xf32>
    %174 = vector.shape_cast %171 : vector<8x384xf32> to vector<1x8x384xf32>
    tpu.vector_store %arg5[%c0_89, %c0_90, %c0_91], %174 {strides = array<i32>} : memref<1x8x384xf32, #tpu.memory_space<vmem>>, vector<1x8x384xf32>,
    return
  }
  func.func @transform_0(%arg0: i32) -> (i32, i32, i32) {
    %c0_i32 = arith.constant 0 : i32
    %c0_i32_0 = arith.constant 0 : i32
    %c0_i32_1 = arith.constant 0 : i32
    return %arg0, %c0_i32, %c0_i32_0 : i32, i32, i32
  }
  func.func @transform_1(%arg0: i32) -> (i32, i32, i32) {
    %c0_i32 = arith.constant 0 : i32
    %c0_i32_0 = arith.constant 0 : i32
    %c0_i32_1 = arith.constant 0 : i32
    %c0_i32_2 = arith.constant 0 : i32
    return %c0_i32, %c0_i32_0, %c0_i32_1 : i32, i32, i32
  }
  func.func @transform_2(%arg0: i32) -> (i32, i32) {
    %c0_i32 = arith.constant 0 : i32
    %c0_i32_0 = arith.constant 0 : i32
    %c0_i32_1 = arith.constant 0 : i32
    return %c0_i32, %c0_i32_0 : i32, i32
  }
  func.func @transform_3(%arg0: i32) -> (i32, i32) {
    %c0_i32 = arith.constant 0 : i32
    %c0_i32_0 = arith.constant 0 : i32
    %c0_i32_1 = arith.constant 0 : i32
    return %c0_i32, %c0_i32_0 : i32, i32
  }
  func.func @transform_4(%arg0: i32) -> (i32, i32, i32) {
    %c0_i32 = arith.constant 0 : i32
    %c0_i32_0 = arith.constant 0 : i32
    %c0_i32_1 = arith.constant 0 : i32
    return %arg0, %c0_i32, %c0_i32_0 : i32, i32, i32
  }
}

</mosaic_0001>

<llo_original>
// kernel: tpu_custom_call.1
$region0: #{tpu_custom_call.1}
  #allocation0 [shape = 'u32[]', space=smem, size = 0x4, offset = 0x4, fixed_abs, tag = 'smem constant byte address 0x4 - core index']
  #allocation1 [shape = 'u32[72,128]{1,0:T(1,128)}', space=vmem, size = 0x9000, scoped, tag = 'internal scratch']
  #allocation2 [shape = 'bf16[4,512]{1,0:T(4,128)(2,1)}', space=vmem, size = 0x1000, scoped, tag = 'scratch operand']
  %s0 = inlined_call_operand.vmem [shape: f32[2,4,512], index: 0, kind: input, shape index: {}]
  %s1 = inlined_call_operand.vmem [shape: bf16[9,8,4], index: 1, kind: input, shape index: {}]
  %s2 = inlined_call_operand.vmem [shape: f32[8,1], index: 2, kind: input, shape index: {}]
  %s3 = inlined_call_operand.vmem [shape: f32[1,384], index: 3, kind: input, shape index: {}]
  %s4 = inlined_call_operand.hbm [shape: f32[2,8,384], index: 4, kind: output, shape index: {}]
  %s5 = sld [smem:[#allocation0]]
  $region49: #{tpu_custom_call.1} parent=0
    _
  %s7 = ssub.s32 1, %s5
  %s8 = scalar_select 0, %s7, %s5
  $region1: #{tpu_custom_call.1} parent=0
    #allocation3 [shape = 'u8[24576]{0}', space=vmem, size = 0x6000, scoped, tag = 'output window, operand 0']
    #allocation4 [shape = 's32[2]{0}', space=sflag, size = 0x8, scoped, tag = 'scoped memory for tpu_custom_call.1']
    %9 = vsyncpa [#allocation4], 0
    %s10 = scalar_lea.sflag [#allocation4], 1
    %11 = vsyncpa %s10, 0
    loop: start=0, step=1, limit=4
    $region2: #{tpu_custom_call.1} parent=1 // loop_pre_header
      _
    $region3: #{tpu_custom_call.1} parent=1 // loop_header
      %s13 = sphi 0, %s17
      %p14 = scmp.ge.s32.totalorder %s13, 4
      %s23 = sphi 0, %s25
      %s26 = sphi 0, %s23
      %s27 = sphi 0, %s26
      %s43 = sphi 0, %s27
      %s47 = sphi 0, %s47
      %s49 = sphi 0, %s47
      %s50 = sphi 0, %s49
      %s64 = sphi 0, %s50
      %s68 = sphi 0, %s68
      %s70 = sphi 0, %s68
      %s71 = sphi 0, %s70
      %s85 = sphi 0, %s71
      %s89 = sphi 0, %s89
      %s91 = sphi 0, %s89
      %s92 = sphi 0, %s91
      %s106 = sphi 0, %s92
      %s112 = sphi 0, %s114
      %s115 = sphi 0, %s112
      %s116 = sphi 0, %s115
      %s132 = sphi 0, %s116
    $region4: #{tpu_custom_call.1} parent=1 // loop_header_branch
      %16 = sbr.rel (%p14) target = $region8
    $region5: #{tpu_custom_call.1} parent=1 // loop_body
      %s18 = ssub.s32 %s13, 1
      %s19 = ssub.s32 %s13, 2
      %s20 = sadd.s32 %s13, 1
      %s21 = ssub.s32 %s13, %s20
      %p22 = scmp.eq.s32.totalorder %s21, 0
      %s24 = sadd.s32 %s23, 1
      %s25 = scalar_select %p22, %s23, %s24
      %p28 = pneg %p22
      %p29 = scmp.eq.s32.totalorder %s13, 1
      %p30 = por %p28, %p29
      %p31 = scmp.ne.s32.totalorder %s23, %s26
      %p32 = scmp.eq.s32.totalorder %s13, 0
      %p33 = por %p31, %p32
      %p34 = scmp.ne.s32.totalorder %s23, %s26
      %p35 = scmp.eq.s32.totalorder %s18, 1
      %p36 = por %p34, %p35
      %p37 = scmp.ne.s32.totalorder %s26, %s27
      %p38 = scmp.eq.s32.totalorder %s18, 0
      %p39 = por %p37, %p38
      %p40 = scmp.ne.s32.totalorder %s26, %s27
      %p41 = scmp.eq.s32.totalorder %s19, 1
      %p42 = por %p40, %p41
      %p44 = scmp.ne.s32.totalorder %s27, %s43
      %p45 = scmp.eq.s32.totalorder %s19, 0
      %p46 = por %p44, %p45
      %s48 = sadd.s32 %s47, 1
      %p51 = scmp.eq.s32.totalorder %s13, 1
      %p52 = scmp.ne.s32.totalorder %s47, %s49
      %p53 = scmp.eq.s32.totalorder %s13, 0
      %p54 = por %p52, %p53
      %p55 = scmp.ne.s32.totalorder %s47, %s49
      %p56 = scmp.eq.s32.totalorder %s18, 1
      %p57 = por %p55, %p56
      %p58 = scmp.ne.s32.totalorder %s49, %s50
      %p59 = scmp.eq.s32.totalorder %s18, 0
      %p60 = por %p58, %p59
      %p61 = scmp.ne.s32.totalorder %s49, %s50
      %p62 = scmp.eq.s32.totalorder %s19, 1
      %p63 = por %p61, %p62
      %p65 = scmp.ne.s32.totalorder %s50, %s64
      %p66 = scmp.eq.s32.totalorder %s19, 0
      %p67 = por %p65, %p66
      %s69 = sadd.s32 %s68, 1
      %p72 = scmp.eq.s32.totalorder %s13, 1
      %p73 = scmp.ne.s32.totalorder %s68, %s70
      %p74 = scmp.eq.s32.totalorder %s13, 0
      %p75 = por %p73, %p74
      %p76 = scmp.ne.s32.totalorder %s68, %s70
      %p77 = scmp.eq.s32.totalorder %s18, 1
      %p78 = por %p76, %p77
      %p79 = scmp.ne.s32.totalorder %s70, %s71
      %p80 = scmp.eq.s32.totalorder %s18, 0
      %p81 = por %p79, %p80
      %p82 = scmp.ne.s32.totalorder %s70, %s71
      %p83 = scmp.eq.s32.totalorder %s19, 1
      %p84 = por %p82, %p83
      %p86 = scmp.ne.s32.totalorder %s71, %s85
      %p87 = scmp.eq.s32.totalorder %s19, 0
      %p88 = por %p86, %p87
      %s90 = sadd.s32 %s89, 1
      %p93 = scmp.eq.s32.totalorder %s13, 1
      %p94 = scmp.ne.s32.totalorder %s89, %s91
      %p95 = scmp.eq.s32.totalorder %s13, 0
      %p96 = por %p94, %p95
      %p97 = scmp.ne.s32.totalorder %s89, %s91
      %p98 = scmp.eq.s32.totalorder %s18, 1
      %p99 = por %p97, %p98
      %p100 = scmp.ne.s32.totalorder %s91, %s92
      %p101 = scmp.eq.s32.totalorder %s18, 0
      %p102 = por %p100, %p101
      %p103 = scmp.ne.s32.totalorder %s91, %s92
      %p104 = scmp.eq.s32.totalorder %s19, 1
      %p105 = por %p103, %p104
      %p107 = scmp.ne.s32.totalorder %s92, %s106
      %p108 = scmp.eq.s32.totalorder %s19, 0
      %p109 = por %p107, %p108
      %s110 = ssub.s32 %s13, %s20
      %p111 = scmp.eq.s32.totalorder %s110, 0
      %s113 = sadd.s32 %s112, 1
      %s114 = scalar_select %p111, %s112, %s113
      %p117 = pneg %p111
      %p118 = scmp.eq.s32.totalorder %s13, 1
      %p119 = por %p117, %p118
      %p120 = scmp.ne.s32.totalorder %s112, %s115
      %p121 = scmp.eq.s32.totalorder %s13, 0
      %p122 = por %p120, %p121
      %p123 = scmp.ne.s32.totalorder %s112, %s115
      %p124 = scmp.eq.s32.totalorder %s18, 1
      %p125 = por %p123, %p124
      %p126 = scmp.ne.s32.totalorder %s115, %s116
      %p127 = scmp.eq.s32.totalorder %s18, 0
      %p128 = por %p126, %p127
      %p129 = scmp.ne.s32.totalorder %s115, %s116
      %p130 = scmp.eq.s32.totalorder %s19, 1
      %p131 = por %p129, %p130
      %p133 = scmp.ne.s32.totalorder %s116, %s132
      %p134 = scmp.eq.s32.totalorder %s19, 0
      %p135 = por %p133, %p134
      %p136 = scmp.le.s32.totalorder 1, %s13
      %p137 = scmp.lt.s32.totalorder %s13, 3
      %p138 = pnand %p136, %p137
      %p139 = pneg %p138
      // Predicated region
      $region9: #{tpu_custom_call.1} parent=5 // pred_check
        _
      $region10: #{tpu_custom_call.1} parent=5 // pred_check_branch
        %141 = sbr.rel (%p138) target = $region12
      $region11: #{tpu_custom_call.1} parent=5 // pred_region
        %s142 = ssub.s32 %s13, 1
        // Predicated region
        $region13: #{tpu_custom_call.1} parent=11 // pred_check
          %p143 = pneg %p60
        $region14: #{tpu_custom_call.1} parent=11 // pred_check_branch
          %145 = sbr.rel (%p143) target = $region16
        $region15: #{tpu_custom_call.1} parent=11 // pred_region
          _
        $region16: #{tpu_custom_call.1} parent=11 // pred_fallthru
          _
        // Predicated region
        $region17: #{tpu_custom_call.1} parent=11 // pred_check
          %p146 = pneg %p81
        $region18: #{tpu_custom_call.1} parent=11 // pred_check_branch
          %148 = sbr.rel (%p146) target = $region20
        $region19: #{tpu_custom_call.1} parent=11 // pred_region
          _
        $region20: #{tpu_custom_call.1} parent=11 // pred_fallthru
          _
        // Predicated region
        $region21: #{tpu_custom_call.1} parent=11 // pred_check
          %p149 = pneg %p102
        $region22: #{tpu_custom_call.1} parent=11 // pred_check_branch
          %151 = sbr.rel (%p149) target = $region24
        $region23: #{tpu_custom_call.1} parent=11 // pred_region
          _
        $region24: #{tpu_custom_call.1} parent=11 // pred_fallthru
          _
      $region12: #{tpu_custom_call.1} parent=5 // pred_fallthru
        _
      %p152 = scmp.lt.s32.totalorder %s13, 2
      // Predicated region
      $region25: #{tpu_custom_call.1} parent=5 // pred_check
        %p153 = pneg %p152
      $region26: #{tpu_custom_call.1} parent=5 // pred_check_branch
        %155 = sbr.rel (%p153) target = $region28
      $region27: #{tpu_custom_call.1} parent=5 // pred_region
        // Predicated region
        $region29: #{tpu_custom_call.1} parent=27 // pred_check
          %p156 = pneg %p33
        $region30: #{tpu_custom_call.1} parent=27 // pred_check_branch
          %158 = sbr.rel (%p156) target = $region32
        $region31: #{tpu_custom_call.1} parent=27 // pred_region
          %p159 = scmp.lt.s32.totalorder %s13, 1
          %s160 = scalar_select %p159, %s13, 1
          %s161 = smul.addr %s160, 4
          %s162 = smul.addr %s161, 4
          %s163 = scalar_lea.vmem %s0, %s162
        $region32: #{tpu_custom_call.1} parent=27 // pred_fallthru
          _
      $region28: #{tpu_custom_call.1} parent=5 // pred_fallthru
        _
      %p164 = scmp.le.s32.totalorder 1, %s13
      %p165 = scmp.lt.s32.totalorder %s13, 3
      %p166 = pnand %p164, %p165
      %p167 = pneg %p166
      // Predicated region
      $region33: #{tpu_custom_call.1} parent=5 // pred_check
        _
      $region34: #{tpu_custom_call.1} parent=5 // pred_check_branch
        %169 = sbr.rel (%p166) target = $region36
      $region35: #{tpu_custom_call.1} parent=5 // pred_region
        %s170 = ssub.s32 %s13, 1
        %p171 = scmp.lt.s32.totalorder %s18, 1
        %s172 = scalar_select %p171, %s18, 1
        %s173 = smul.addr %s172, 4
        %s174 = smul.addr %s173, 4
        %s175 = scalar_lea.vmem %s0, %s174
        %p176 = pneg %p39
        %p177 = pneg %p36
        %p178 = pneg %p60
        %p179 = pneg %p57
        %p180 = pneg %p81
        %p181 = pneg %p78
        %p182 = pneg %p102
        %p183 = pneg %p99
        %p184 = pneg %p128
        %p185 = pneg %p125
        %s186 = sand.u32 %s115, 1
        %s187 = scalar_lea.sflag [#allocation4], %s186
        %s188 = sand.u32 %s115, 1
        %s189 = smul.addr %s188, 24
        %s190 = scalar_lea.vmem [#allocation3], %s189
        %p191 = scmp.lt.s32.totalorder %s18, 1
        %s192 = scalar_select %p191, %s18, 1
        %s193 = smul.addr %s192, 4
        %s194 = smul.addr %s193, 4
        %s195 = scalar_lea.vmem %s0, %s194
        %v197 = vld [vmem:[%s195] sm:$0xff]
        %v198 = vld [vmem:[%s195 + $0x8] sm:$0xff]
        %v199 = vld [vmem:[%s3] sm:$0x7]
        %v200 = vmul.f32 %v197, %v197
        %v201 = vmul.f32 %v198, %v198
        %204 = vst [vmem:[#allocation1] ss:$2 sm:$0xff] %v200
        %s205 = scalar_lea.vmem [#allocation1], 16
        %206 = vst [vmem:[%s205] ss:$2 sm:$0xff] %v201
        %v207 = vld.sshfl [vmem:[#allocation1] sm:$0xff pattern:$0x75316420]
        %v208 = vld.sshfl [vmem:[#allocation1 + $0x8] sm:$0xff pattern:$0x75316420]
        %v209 = vld.sshfl [vmem:[#allocation1 + $0x10] sm:$0xff pattern:$0x75316420]
        %v210 = vld.sshfl [vmem:[#allocation1 + $0x18] sm:$0xff pattern:$0x75316420]
        %vm215 = vcmask 1043456
        %v216 = vsel %vm215, %v207, 0.0
        %v217 = vsel %vm215, %v208, 0.0
        %v218 = vadd.f32 %v216, %v217
        %v219 = vsel %vm215, %v209, 0.0
        %v220 = vadd.f32 %v218, %v219
        %v221 = vsel %vm215, %v210, 0.0
        %v222 = vadd.f32 %v220, %v221
        %223 = vadd.xlane.f32.xlu0 %v222
        %v224 = vpop.xlane.xlu0 %223
        %v225 = vrsqrt.pop %v224
        %v226 = vmul.f32 %v225, %v224
        %v227 = vmul.f32 %v226, %v225
        %v228 = vmul.f32 0.5, %v227
        %v229 = vsub.f32 1.5, %v228
        %v230 = vmul.f32 %v225, %v229
        %v231 = vmul.f32 %v224, %v230
        %vm232 = vcmp.eq.f32.partialorder %v224, inf
        %v233 = vsel %vm232, %v224, %v231
        %vm234 = vcmp.eq.f32.partialorder %v224, 0.0
        %v235 = vand.u32 %v224, 2147483648
        %v236 = vsel %vm234, %v235, %v233
        %v237 = vmax.f32 %v236, 1e-05
        %v238 = vmax.f32 %v237, -0.99999
        %v239 = vmin.f32 %v238, 0.99999
        %v240 = vadd.f32 %v239, 1.0
        %v241 = vlog2.pop %v240
        %v242 = vmul.f32 %v241, 0.6931472
        %v243 = vmul.f32 -0.5, %v239
        %v244 = vadd.f32 %v243, 1.0
        %v245 = vmul.f32 %v244, %v239
        %v246 = vand.u32 2147483647, %v239
        %vm247 = vcmp.lt.f32.partialorder %v246, 0.0004427343
        %v248 = vsel %vm247, %v245, %v242
        %v249 = vsub.f32 0.0, %v239
        %v250 = vadd.f32 %v249, 1.0
        %v251 = vlog2.pop %v250
        %v252 = vmul.f32 %v251, 0.6931472
        %v253 = vmul.f32 -0.5, %v249
        %v254 = vadd.f32 %v253, 1.0
        %v255 = vmul.f32 %v254, %v249
        %v256 = vand.u32 2147483647, %v249
        %vm257 = vcmp.lt.f32.partialorder %v256, 0.0004427343
        %v258 = vsel %vm257, %v255, %v252
        %v259 = vsub.f32 %v248, %v258
        %v260 = vmul.f32 %v259, 0.5
        %v261 = vrcp.pop %v237
        %v262 = vmul.f32 %v260, %v261
        %v265 = vunpack.c.l.s4 839922192
        %v266 = vunpack.c.0.s8 %v265
        %v267 = vperm.slane %v262, %v266
        %v269 = vmul.f32 %v197, %v267
        %v270 = vmul.f32 %v198, %v267
        %273 = vst [vmem:[#allocation1] ss:$2 sm:$0xff] %v269
        %s274 = scalar_lea.vmem [#allocation1], 16
        %275 = vst [vmem:[%s274] ss:$2 sm:$0xff] %v270
        %v276 = vld.sshfl [vmem:[#allocation1] sm:$0xff pattern:$0x75316420]
        %v277 = vld.sshfl [vmem:[#allocation1 + $0x8] sm:$0xff pattern:$0x75316420]
        %v278 = vld.sshfl [vmem:[#allocation1 + $0x10] sm:$0xff pattern:$0x75316420]
        %v279 = vld.sshfl [vmem:[#allocation1 + $0x18] sm:$0xff pattern:$0x75316420]
        %v284 = vpack.c.bf16 %v277, %v276
        %v285 = vpack.c.bf16 %v279, %v278
        %v288 = vrot.slane %v284, 2
        %v289 = vrot.slane %v285, 4
        %v290 = vrot.slane %v285, 6
        %vm291 = vcmask 1041408
        %v294 = vsel %vm291, %v284, %v288
        %vm295 = vcmask 1045508
        %v298 = vsel %vm295, %v289, %v290
        %v299 = vsel %vm215, %v294, %v298
        %301 = vst [vmem:[#allocation2] sm:$0xff] %v299
        %v302 = vld [vmem:[%s1] sm:$0xf]
        %v303 = vld [vmem:[#allocation2] sm:$0x3f]
        %s304 = scalar_lea.vmem %s1, 4
        %v305 = vld [vmem:[%s304] sm:$0xf]
        %v306 = vld [vmem:[#allocation2] sm:$0xff]
        %308 = vst [vmem:[#allocation1] ss:$4 sm:$0xff] %v306
        %v309 = vld.sshfl [vmem:[#allocation1] sm:$0xff pattern:$0x73625140]
        %v311 = vld.sshfl [vmem:[#allocation1 + $0x8] sm:$0xff pattern:$0x73625140]
        %v313 = vld.sshfl [vmem:[#allocation1 + $0x10] sm:$0xff pattern:$0x73625140]
        %v315 = vld.sshfl [vmem:[#allocation1 + $0x18] sm:$0xff pattern:$0x73625140]
        %317 = vrot.lane.b32.xlu0 %v309, 127
        %v318 = vpop.permute.xlu0 %317
        %319 = vrot.lane.b32.xlu0 %v311, 127
        %v320 = vpop.permute.xlu0 %319
        %321 = vrot.lane.b32.xlu0 %v313, 127
        %v322 = vpop.permute.xlu0 %321
        %323 = vrot.lane.b32.xlu0 %v315, 127
        %v324 = vpop.permute.xlu0 %323
        %vm325 = vcmask 1039360
        %v326 = vsel %vm325, %v318, %v320
        %v327 = vsel %vm325, %v320, %v322
        %v328 = vsel %vm325, %v322, %v324
        %vm329 = vcmask 31744
        %v331 = vsel %vm329, %v305, 0
        %v334 = vsel %vm291, %v326, 0
        %v337 = vsel %vm291, %v327, 0
        %v340 = vsel %vm291, %v328, 0
        %342 = vmatpush.bf16.msra.mxu0 0
        %343 = vmatpush.bf16.msra.mxu0 0
        %344 = vmatpush.bf16.msra.mxu0 0
        %345 = vmatpush.bf16.msra.mxu0 0
        %346 = vmatpush.bf16.msra.mxu0 0
        %347 = vmatpush.bf16.msra.mxu0 0
        %348 = vmatpush.bf16.msra.mxu0 0
        %349 = vmatpush.bf16.msra.mxu0 %v334
        %350 = vmatmul.bf16.gmra.mxu0 %v331
        %v351 = vpop.f32.mrf.mxu0
        %v352 = vadd.f32 0.0, %v351
        %v353 = vpop.f32.mrf.mxu0
        %354 = vdwg.mxu0
        %355 = vmatpush.bf16.msra.mxu0 0
        %356 = vmatpush.bf16.msra.mxu0 0
        %357 = vmatpush.bf16.msra.mxu0 0
        %358 = vmatpush.bf16.msra.mxu0 0
        %359 = vmatpush.bf16.msra.mxu0 0
        %360 = vmatpush.bf16.msra.mxu0 0
        %361 = vmatpush.bf16.msra.mxu0 0
        %362 = vmatpush.bf16.msra.mxu0 %v337
        %363 = vmatmul.bf16.gmra.mxu0 %v331
        %v364 = vpop.f32.mrf.mxu0
        %v365 = vadd.f32 0.0, %v364
        %v366 = vpop.f32.mrf.mxu0
        %367 = vdwg.mxu0
        %368 = vmatpush.bf16.msra.mxu0 0
        %369 = vmatpush.bf16.msra.mxu0 0
        %370 = vmatpush.bf16.msra.mxu0 0
        %371 = vmatpush.bf16.msra.mxu0 0
        %372 = vmatpush.bf16.msra.mxu0 0
        %373 = vmatpush.bf16.msra.mxu0 0
        %374 = vmatpush.bf16.msra.mxu0 0
        %375 = vmatpush.bf16.msra.mxu0 %v340
        %376 = vmatmul.bf16.gmra.mxu0 %v331
        %v377 = vpop.f32.mrf.mxu0
        %v378 = vadd.f32 0.0, %v377
        %v379 = vpop.f32.mrf.mxu0
        %380 = vdwg.mxu0
        %382 = vst [vmem:[#allocation1] ss:$4 sm:$0xff] %v303
        %v383 = vld.sshfl [vmem:[#allocation1] sm:$0xff pattern:$0x73625140]
        %v384 = vld.sshfl [vmem:[#allocation1 + $0x8] sm:$0xff pattern:$0x73625140]
        %v385 = vld.sshfl [vmem:[#allocation1 + $0x10] sm:$0xff pattern:$0x73625140]
        %v387 = vsel %vm329, %v302, 0
        %v389 = vsel %vm291, %v383, 0
        %v391 = vsel %vm291, %v384, 0
        %v393 = vsel %vm291, %v385, 0
        %395 = vmatpush.bf16.msra.mxu0 0
        %396 = vmatpush.bf16.msra.mxu0 0
        %397 = vmatpush.bf16.msra.mxu0 0
        %398 = vmatpush.bf16.msra.mxu0 0
        %399 = vmatpush.bf16.msra.mxu0 0
        %400 = vmatpush.bf16.msra.mxu0 0
        %401 = vmatpush.bf16.msra.mxu0 0
        %402 = vmatpush.bf16.msra.mxu0 %v389
        %403 = vmatmul.bf16.gmra.mxu0 %v387
        %v404 = vpop.f32.mrf.mxu0
        %v405 = vadd.f32 %v352, %v404
        %v406 = vpop.f32.mrf.mxu0
        %407 = vdwg.mxu0
        %408 = vmatpush.bf16.msra.mxu0 0
        %409 = vmatpush.bf16.msra.mxu0 0
        %410 = vmatpush.bf16.msra.mxu0 0
        %411 = vmatpush.bf16.msra.mxu0 0
        %412 = vmatpush.bf16.msra.mxu0 0
        %413 = vmatpush.bf16.msra.mxu0 0
        %414 = vmatpush.bf16.msra.mxu0 0
        %415 = vmatpush.bf16.msra.mxu0 %v391
        %416 = vmatmul.bf16.gmra.mxu0 %v387
        %v417 = vpop.f32.mrf.mxu0
        %v418 = vadd.f32 %v365, %v417
        %v419 = vpop.f32.mrf.mxu0
        %420 = vdwg.mxu0
        %421 = vmatpush.bf16.msra.mxu0 0
        %422 = vmatpush.bf16.msra.mxu0 0
        %423 = vmatpush.bf16.msra.mxu0 0
        %424 = vmatpush.bf16.msra.mxu0 0
        %425 = vmatpush.bf16.msra.mxu0 0
        %426 = vmatpush.bf16.msra.mxu0 0
        %427 = vmatpush.bf16.msra.mxu0 0
        %428 = vmatpush.bf16.msra.mxu0 %v393
        %429 = vmatmul.bf16.gmra.mxu0 %v387
        %v430 = vpop.f32.mrf.mxu0
        %v431 = vadd.f32 %v378, %v430
        %v432 = vpop.f32.mrf.mxu0
        %433 = vdwg.mxu0
        %s434 = scalar_lea.vmem %s1, 8
        %v435 = vld [vmem:[%s434] sm:$0xf]
        %v436 = vld [vmem:[#allocation2] sm:$0xff]
        %438 = vst [vmem:[#allocation1] ss:$4 sm:$0xff] %v436
        %v439 = vld.sshfl [vmem:[#allocation1] sm:$0xff pattern:$0x73625140]
        %v441 = vld.sshfl [vmem:[#allocation1 + $0x8] sm:$0xff pattern:$0x73625140]
        %v443 = vld.sshfl [vmem:[#allocation1 + $0x10] sm:$0xff pattern:$0x73625140]
        %v445 = vld.sshfl [vmem:[#allocation1 + $0x18] sm:$0xff pattern:$0x73625140]
        %447 = vrot.lane.b32.xlu0 %v439, 126
        %v448 = vpop.permute.xlu0 %447
        %449 = vrot.lane.b32.xlu0 %v441, 126
        %v450 = vpop.permute.xlu0 %449
        %451 = vrot.lane.b32.xlu0 %v443, 126
        %v452 = vpop.permute.xlu0 %451
        %453 = vrot.lane.b32.xlu0 %v445, 126
        %v454 = vpop.permute.xlu0 %453
        %vm455 = vcmask 1031168
        %v456 = vsel %vm455, %v448, %v450
        %v457 = vsel %vm455, %v450, %v452
        %v458 = vsel %vm455, %v452, %v454
        %v460 = vsel %vm329, %v435, 0
        %v463 = vsel %vm291, %v456, 0
        %v466 = vsel %vm291, %v457, 0
        %v469 = vsel %vm291, %v458, 0
        %471 = vmatpush.bf16.msra.mxu0 0
        %472 = vmatpush.bf16.msra.mxu0 0
        %473 = vmatpush.bf16.msra.mxu0 0
        %474 = vmatpush.bf16.msra.mxu0 0
        %475 = vmatpush.bf16.msra.mxu0 0
        %476 = vmatpush.bf16.msra.mxu0 0
        %477 = vmatpush.bf16.msra.mxu0 0
        %478 = vmatpush.bf16.msra.mxu0 %v463
        %479 = vmatmul.bf16.gmra.mxu0 %v460
        %v480 = vpop.f32.mrf.mxu0
        %v481 = vadd.f32 0.0, %v480
        %v482 = vpop.f32.mrf.mxu0
        %483 = vdwg.mxu0
        %484 = vmatpush.bf16.msra.mxu0 0
        %485 = vmatpush.bf16.msra.mxu0 0
        %486 = vmatpush.bf16.msra.mxu0 0
        %487 = vmatpush.bf16.msra.mxu0 0
        %488 = vmatpush.bf16.msra.mxu0 0
        %489 = vmatpush.bf16.msra.mxu0 0
        %490 = vmatpush.bf16.msra.mxu0 0
        %491 = vmatpush.bf16.msra.mxu0 %v466
        %492 = vmatmul.bf16.gmra.mxu0 %v460
        %v493 = vpop.f32.mrf.mxu0
        %v494 = vadd.f32 0.0, %v493
        %v495 = vpop.f32.mrf.mxu0
        %496 = vdwg.mxu0
        %497 = vmatpush.bf16.msra.mxu0 0
        %498 = vmatpush.bf16.msra.mxu0 0
        %499 = vmatpush.bf16.msra.mxu0 0
        %500 = vmatpush.bf16.msra.mxu0 0
        %501 = vmatpush.bf16.msra.mxu0 0
        %502 = vmatpush.bf16.msra.mxu0 0
        %503 = vmatpush.bf16.msra.mxu0 0
        %504 = vmatpush.bf16.msra.mxu0 %v469
        %505 = vmatmul.bf16.gmra.mxu0 %v460
        %v506 = vpop.f32.mrf.mxu0
        %v507 = vadd.f32 0.0, %v506
        %v508 = vpop.f32.mrf.mxu0
        %509 = vdwg.mxu0
        %v510 = vadd.f32 %v405, %v481
        %v511 = vadd.f32 %v418, %v494
        %v512 = vadd.f32 %v431, %v507
        %s513 = scalar_lea.vmem %s1, 12
        %v514 = vld [vmem:[%s513] sm:$0xf]
        %v515 = vld [vmem:[#allocation2] sm:$0xff]
        %517 = vst [vmem:[#allocation1] ss:$4 sm:$0xff] %v515
        %v518 = vld.sshfl [vmem:[#allocation1] sm:$0xff pattern:$0x73625140]
        %v520 = vld.sshfl [vmem:[#allocation1 + $0x8] sm:$0xff pattern:$0x73625140]
        %v522 = vld.sshfl [vmem:[#allocation1 + $0x10] sm:$0xff pattern:$0x73625140]
        %v524 = vld.sshfl [vmem:[#allocation1 + $0x18] sm:$0xff pattern:$0x73625140]
        %526 = vrot.lane.b32.xlu0 %v518, 110
        %v527 = vpop.permute.xlu0 %526
        %528 = vrot.lane.b32.xlu0 %v520, 110
        %v529 = vpop.permute.xlu0 %528
        %530 = vrot.lane.b32.xlu0 %v522, 110
        %v531 = vpop.permute.xlu0 %530
        %532 = vrot.lane.b32.xlu0 %v524, 110
        %v533 = vpop.permute.xlu0 %532
        %vm534 = vcmask 900096
        %v535 = vsel %vm534, %v527, %v529
        %v536 = vsel %vm534, %v529, %v531
        %v537 = vsel %vm534, %v531, %v533
        %v539 = vsel %vm329, %v514, 0
        %v542 = vsel %vm291, %v535, 0
        %v545 = vsel %vm291, %v536, 0
        %v548 = vsel %vm291, %v537, 0
        %550 = vmatpush.bf16.msra.mxu0 0
        %551 = vmatpush.bf16.msra.mxu0 0
        %552 = vmatpush.bf16.msra.mxu0 0
        %553 = vmatpush.bf16.msra.mxu0 0
        %554 = vmatpush.bf16.msra.mxu0 0
        %555 = vmatpush.bf16.msra.mxu0 0
        %556 = vmatpush.bf16.msra.mxu0 0
        %557 = vmatpush.bf16.msra.mxu0 %v542
        %558 = vmatmul.bf16.gmra.mxu0 %v539
        %v559 = vpop.f32.mrf.mxu0
        %v560 = vadd.f32 0.0, %v559
        %v561 = vpop.f32.mrf.mxu0
        %562 = vdwg.mxu0
        %563 = vmatpush.bf16.msra.mxu0 0
        %564 = vmatpush.bf16.msra.mxu0 0
        %565 = vmatpush.bf16.msra.mxu0 0
        %566 = vmatpush.bf16.msra.mxu0 0
        %567 = vmatpush.bf16.msra.mxu0 0
        %568 = vmatpush.bf16.msra.mxu0 0
        %569 = vmatpush.bf16.msra.mxu0 0
        %570 = vmatpush.bf16.msra.mxu0 %v545
        %571 = vmatmul.bf16.gmra.mxu0 %v539
        %v572 = vpop.f32.mrf.mxu0
        %v573 = vadd.f32 0.0, %v572
        %v574 = vpop.f32.mrf.mxu0
        %575 = vdwg.mxu0
        %576 = vmatpush.bf16.msra.mxu0 0
        %577 = vmatpush.bf16.msra.mxu0 0
        %578 = vmatpush.bf16.msra.mxu0 0
        %579 = vmatpush.bf16.msra.mxu0 0
        %580 = vmatpush.bf16.msra.mxu0 0
        %581 = vmatpush.bf16.msra.mxu0 0
        %582 = vmatpush.bf16.msra.mxu0 0
        %583 = vmatpush.bf16.msra.mxu0 %v548
        %584 = vmatmul.bf16.gmra.mxu0 %v539
        %v585 = vpop.f32.mrf.mxu0
        %v586 = vadd.f32 0.0, %v585
        %v587 = vpop.f32.mrf.mxu0
        %588 = vdwg.mxu0
        %v589 = vadd.f32 %v510, %v560
        %v590 = vadd.f32 %v511, %v573
        %v591 = vadd.f32 %v512, %v586
        %s592 = scalar_lea.vmem %s1, 16
        %v593 = vld [vmem:[%s592] sm:$0xf]
        %v594 = vld [vmem:[#allocation2] sm:$0xff]
        %596 = vst [vmem:[#allocation1] ss:$4 sm:$0xff] %v594
        %v597 = vld.sshfl [vmem:[#allocation1] sm:$0xff pattern:$0x73625140]
        %v599 = vld.sshfl [vmem:[#allocation1 + $0x8] sm:$0xff pattern:$0x73625140]
        %v601 = vld.sshfl [vmem:[#allocation1 + $0x10] sm:$0xff pattern:$0x73625140]
        %v603 = vld.sshfl [vmem:[#allocation1 + $0x18] sm:$0xff pattern:$0x73625140]
        %605 = vrot.lane.b32.xlu0 %v597, 109
        %v606 = vpop.permute.xlu0 %605
        %607 = vrot.lane.b32.xlu0 %v599, 109
        %v608 = vpop.permute.xlu0 %607
        %609 = vrot.lane.b32.xlu0 %v601, 109
        %v610 = vpop.permute.xlu0 %609
        %611 = vrot.lane.b32.xlu0 %v603, 109
        %v612 = vpop.permute.xlu0 %611
        %vm613 = vcmask 891904
        %v614 = vsel %vm613, %v606, %v608
        %v615 = vsel %vm613, %v608, %v610
        %v616 = vsel %vm613, %v610, %v612
        %v618 = vsel %vm329, %v593, 0
        %v621 = vsel %vm291, %v614, 0
        %v624 = vsel %vm291, %v615, 0
        %v627 = vsel %vm291, %v616, 0
        %629 = vmatpush.bf16.msra.mxu0 0
        %630 = vmatpush.bf16.msra.mxu0 0
        %631 = vmatpush.bf16.msra.mxu0 0
        %632 = vmatpush.bf16.msra.mxu0 0
        %633 = vmatpush.bf16.msra.mxu0 0
        %634 = vmatpush.bf16.msra.mxu0 0
        %635 = vmatpush.bf16.msra.mxu0 0
        %636 = vmatpush.bf16.msra.mxu0 %v621
        %637 = vmatmul.bf16.gmra.mxu0 %v618
        %v638 = vpop.f32.mrf.mxu0
        %v639 = vadd.f32 0.0, %v638
        %v640 = vpop.f32.mrf.mxu0
        %641 = vdwg.mxu0
        %642 = vmatpush.bf16.msra.mxu0 0
        %643 = vmatpush.bf16.msra.mxu0 0
        %644 = vmatpush.bf16.msra.mxu0 0
        %645 = vmatpush.bf16.msra.mxu0 0
        %646 = vmatpush.bf16.msra.mxu0 0
        %647 = vmatpush.bf16.msra.mxu0 0
        %648 = vmatpush.bf16.msra.mxu0 0
        %649 = vmatpush.bf16.msra.mxu0 %v624
        %650 = vmatmul.bf16.gmra.mxu0 %v618
        %v651 = vpop.f32.mrf.mxu0
        %v652 = vadd.f32 0.0, %v651
        %v653 = vpop.f32.mrf.mxu0
        %654 = vdwg.mxu0
        %655 = vmatpush.bf16.msra.mxu0 0
        %656 = vmatpush.bf16.msra.mxu0 0
        %657 = vmatpush.bf16.msra.mxu0 0
        %658 = vmatpush.bf16.msra.mxu0 0
        %659 = vmatpush.bf16.msra.mxu0 0
        %660 = vmatpush.bf16.msra.mxu0 0
        %661 = vmatpush.bf16.msra.mxu0 0
        %662 = vmatpush.bf16.msra.mxu0 %v627
        %663 = vmatmul.bf16.gmra.mxu0 %v618
        %v664 = vpop.f32.mrf.mxu0
        %v665 = vadd.f32 0.0, %v664
        %v666 = vpop.f32.mrf.mxu0
        %667 = vdwg.mxu0
        %v668 = vadd.f32 %v589, %v639
        %v669 = vadd.f32 %v590, %v652
        %v670 = vadd.f32 %v591, %v665
        %s671 = scalar_lea.vmem %s1, 20
        %v672 = vld [vmem:[%s671] sm:$0xf]
        %v673 = vld [vmem:[#allocation2] sm:$0xff]
        %675 = vst [vmem:[#allocation1] ss:$4 sm:$0xff] %v673
        %v676 = vld.sshfl [vmem:[#allocation1] sm:$0xff pattern:$0x73625140]
        %v678 = vld.sshfl [vmem:[#allocation1 + $0x8] sm:$0xff pattern:$0x73625140]
        %v680 = vld.sshfl [vmem:[#allocation1 + $0x10] sm:$0xff pattern:$0x73625140]
        %v682 = vld.sshfl [vmem:[#allocation1 + $0x18] sm:$0xff pattern:$0x73625140]
        %684 = vrot.lane.b32.xlu0 %v676, 108
        %v685 = vpop.permute.xlu0 %684
        %686 = vrot.lane.b32.xlu0 %v678, 108
        %v687 = vpop.permute.xlu0 %686
        %688 = vrot.lane.b32.xlu0 %v680, 108
        %v689 = vpop.permute.xlu0 %688
        %690 = vrot.lane.b32.xlu0 %v682, 108
        %v691 = vpop.permute.xlu0 %690
        %vm692 = vcmask 883712
        %v693 = vsel %vm692, %v685, %v687
        %v694 = vsel %vm692, %v687, %v689
        %v695 = vsel %vm692, %v689, %v691
        %v697 = vsel %vm329, %v672, 0
        %v700 = vsel %vm291, %v693, 0
        %v703 = vsel %vm291, %v694, 0
        %v706 = vsel %vm291, %v695, 0
        %708 = vmatpush.bf16.msra.mxu0 0
        %709 = vmatpush.bf16.msra.mxu0 0
        %710 = vmatpush.bf16.msra.mxu0 0
        %711 = vmatpush.bf16.msra.mxu0 0
        %712 = vmatpush.bf16.msra.mxu0 0
        %713 = vmatpush.bf16.msra.mxu0 0
        %714 = vmatpush.bf16.msra.mxu0 0
        %715 = vmatpush.bf16.msra.mxu0 %v700
        %716 = vmatmul.bf16.gmra.mxu0 %v697
        %v717 = vpop.f32.mrf.mxu0
        %v718 = vadd.f32 0.0, %v717
        %v719 = vpop.f32.mrf.mxu0
        %720 = vdwg.mxu0
        %721 = vmatpush.bf16.msra.mxu0 0
        %722 = vmatpush.bf16.msra.mxu0 0
        %723 = vmatpush.bf16.msra.mxu0 0
        %724 = vmatpush.bf16.msra.mxu0 0
        %725 = vmatpush.bf16.msra.mxu0 0
        %726 = vmatpush.bf16.msra.mxu0 0
        %727 = vmatpush.bf16.msra.mxu0 0
        %728 = vmatpush.bf16.msra.mxu0 %v703
        %729 = vmatmul.bf16.gmra.mxu0 %v697
        %v730 = vpop.f32.mrf.mxu0
        %v731 = vadd.f32 0.0, %v730
        %v732 = vpop.f32.mrf.mxu0
        %733 = vdwg.mxu0
        %734 = vmatpush.bf16.msra.mxu0 0
        %735 = vmatpush.bf16.msra.mxu0 0
        %736 = vmatpush.bf16.msra.mxu0 0
        %737 = vmatpush.bf16.msra.mxu0 0
        %738 = vmatpush.bf16.msra.mxu0 0
        %739 = vmatpush.bf16.msra.mxu0 0
        %740 = vmatpush.bf16.msra.mxu0 0
        %741 = vmatpush.bf16.msra.mxu0 %v706
        %742 = vmatmul.bf16.gmra.mxu0 %v697
        %v743 = vpop.f32.mrf.mxu0
        %v744 = vadd.f32 0.0, %v743
        %v745 = vpop.f32.mrf.mxu0
        %746 = vdwg.mxu0
        %v747 = vadd.f32 %v668, %v718
        %v748 = vadd.f32 %v669, %v731
        %v749 = vadd.f32 %v670, %v744
        %s750 = scalar_lea.vmem %s1, 24
        %v751 = vld [vmem:[%s750] sm:$0xf]
        %v752 = vld [vmem:[#allocation2] sm:$0xff]
        %754 = vst [vmem:[#allocation1] ss:$4 sm:$0xff] %v752
        %v755 = vld.sshfl [vmem:[#allocation1] sm:$0xff pattern:$0x73625140]
        %v757 = vld.sshfl [vmem:[#allocation1 + $0x8] sm:$0xff pattern:$0x73625140]
        %v759 = vld.sshfl [vmem:[#allocation1 + $0x10] sm:$0xff pattern:$0x73625140]
        %v761 = vld.sshfl [vmem:[#allocation1 + $0x18] sm:$0xff pattern:$0x73625140]
        %763 = vrot.lane.b32.xlu0 %v755, 92
        %v764 = vpop.permute.xlu0 %763
        %765 = vrot.lane.b32.xlu0 %v757, 92
        %v766 = vpop.permute.xlu0 %765
        %767 = vrot.lane.b32.xlu0 %v759, 92
        %v768 = vpop.permute.xlu0 %767
        %769 = vrot.lane.b32.xlu0 %v761, 92
        %v770 = vpop.permute.xlu0 %769
        %vm771 = vcmask 752640
        %v772 = vsel %vm771, %v764, %v766
        %v773 = vsel %vm771, %v766, %v768
        %v774 = vsel %vm771, %v768, %v770
        %v776 = vsel %vm329, %v751, 0
        %v779 = vsel %vm291, %v772, 0
        %v782 = vsel %vm291, %v773, 0
        %v785 = vsel %vm291, %v774, 0
        %787 = vmatpush.bf16.msra.mxu0 0
        %788 = vmatpush.bf16.msra.mxu0 0
        %789 = vmatpush.bf16.msra.mxu0 0
        %790 = vmatpush.bf16.msra.mxu0 0
        %791 = vmatpush.bf16.msra.mxu0 0
        %792 = vmatpush.bf16.msra.mxu0 0
        %793 = vmatpush.bf16.msra.mxu0 0
        %794 = vmatpush.bf16.msra.mxu0 %v779
        %795 = vmatmul.bf16.gmra.mxu0 %v776
        %v796 = vpop.f32.mrf.mxu0
        %v797 = vadd.f32 0.0, %v796
        %v798 = vpop.f32.mrf.mxu0
        %799 = vdwg.mxu0
        %800 = vmatpush.bf16.msra.mxu0 0
        %801 = vmatpush.bf16.msra.mxu0 0
        %802 = vmatpush.bf16.msra.mxu0 0
        %803 = vmatpush.bf16.msra.mxu0 0
        %804 = vmatpush.bf16.msra.mxu0 0
        %805 = vmatpush.bf16.msra.mxu0 0
        %806 = vmatpush.bf16.msra.mxu0 0
        %807 = vmatpush.bf16.msra.mxu0 %v782
        %808 = vmatmul.bf16.gmra.mxu0 %v776
        %v809 = vpop.f32.mrf.mxu0
        %v810 = vadd.f32 0.0, %v809
        %v811 = vpop.f32.mrf.mxu0
        %812 = vdwg.mxu0
        %813 = vmatpush.bf16.msra.mxu0 0
        %814 = vmatpush.bf16.msra.mxu0 0
        %815 = vmatpush.bf16.msra.mxu0 0
        %816 = vmatpush.bf16.msra.mxu0 0
        %817 = vmatpush.bf16.msra.mxu0 0
        %818 = vmatpush.bf16.msra.mxu0 0
        %819 = vmatpush.bf16.msra.mxu0 0
        %820 = vmatpush.bf16.msra.mxu0 %v785
        %821 = vmatmul.bf16.gmra.mxu0 %v776
        %v822 = vpop.f32.mrf.mxu0
        %v823 = vadd.f32 0.0, %v822
        %v824 = vpop.f32.mrf.mxu0
        %825 = vdwg.mxu0
        %v826 = vadd.f32 %v747, %v797
        %v827 = vadd.f32 %v748, %v810
        %v828 = vadd.f32 %v749, %v823
        %s829 = scalar_lea.vmem %s1, 28
        %v830 = vld [vmem:[%s829] sm:$0xf]
        %v831 = vld [vmem:[#allocation2] sm:$0xff]
        %833 = vst [vmem:[#allocation1] ss:$4 sm:$0xff] %v831
        %v834 = vld.sshfl [vmem:[#allocation1] sm:$0xff pattern:$0x73625140]
        %v836 = vld.sshfl [vmem:[#allocation1 + $0x8] sm:$0xff pattern:$0x73625140]
        %v838 = vld.sshfl [vmem:[#allocation1 + $0x10] sm:$0xff pattern:$0x73625140]
        %v840 = vld.sshfl [vmem:[#allocation1 + $0x18] sm:$0xff pattern:$0x73625140]
        %842 = vrot.lane.b32.xlu0 %v834, 91
        %v843 = vpop.permute.xlu0 %842
        %844 = vrot.lane.b32.xlu0 %v836, 91
        %v845 = vpop.permute.xlu0 %844
        %846 = vrot.lane.b32.xlu0 %v838, 91
        %v847 = vpop.permute.xlu0 %846
        %848 = vrot.lane.b32.xlu0 %v840, 91
        %v849 = vpop.permute.xlu0 %848
        %vm850 = vcmask 744448
        %v851 = vsel %vm850, %v843, %v845
        %v852 = vsel %vm850, %v845, %v847
        %v853 = vsel %vm850, %v847, %v849
        %v855 = vsel %vm329, %v830, 0
        %v858 = vsel %vm291, %v851, 0
        %v861 = vsel %vm291, %v852, 0
        %v864 = vsel %vm291, %v853, 0
        %866 = vmatpush.bf16.msra.mxu0 0
        %867 = vmatpush.bf16.msra.mxu0 0
        %868 = vmatpush.bf16.msra.mxu0 0
        %869 = vmatpush.bf16.msra.mxu0 0
        %870 = vmatpush.bf16.msra.mxu0 0
        %871 = vmatpush.bf16.msra.mxu0 0
        %872 = vmatpush.bf16.msra.mxu0 0
        %873 = vmatpush.bf16.msra.mxu0 %v858
        %874 = vmatmul.bf16.gmra.mxu0 %v855
        %v875 = vpop.f32.mrf.mxu0
        %v876 = vadd.f32 0.0, %v875
        %v877 = vpop.f32.mrf.mxu0
        %878 = vdwg.mxu0
        %879 = vmatpush.bf16.msra.mxu0 0
        %880 = vmatpush.bf16.msra.mxu0 0
        %881 = vmatpush.bf16.msra.mxu0 0
        %882 = vmatpush.bf16.msra.mxu0 0
        %883 = vmatpush.bf16.msra.mxu0 0
        %884 = vmatpush.bf16.msra.mxu0 0
        %885 = vmatpush.bf16.msra.mxu0 0
        %886 = vmatpush.bf16.msra.mxu0 %v861
        %887 = vmatmul.bf16.gmra.mxu0 %v855
        %v888 = vpop.f32.mrf.mxu0
        %v889 = vadd.f32 0.0, %v888
        %v890 = vpop.f32.mrf.mxu0
        %891 = vdwg.mxu0
        %892 = vmatpush.bf16.msra.mxu0 0
        %893 = vmatpush.bf16.msra.mxu0 0
        %894 = vmatpush.bf16.msra.mxu0 0
        %895 = vmatpush.bf16.msra.mxu0 0
        %896 = vmatpush.bf16.msra.mxu0 0
        %897 = vmatpush.bf16.msra.mxu0 0
        %898 = vmatpush.bf16.msra.mxu0 0
        %899 = vmatpush.bf16.msra.mxu0 %v864
        %900 = vmatmul.bf16.gmra.mxu0 %v855
        %v901 = vpop.f32.mrf.mxu0
        %v902 = vadd.f32 0.0, %v901
        %v903 = vpop.f32.mrf.mxu0
        %904 = vdwg.mxu0
        %v905 = vadd.f32 %v826, %v876
        %v906 = vadd.f32 %v827, %v889
        %v907 = vadd.f32 %v828, %v902
        %s908 = scalar_lea.vmem %s1, 32
        %v909 = vld [vmem:[%s908] sm:$0xf]
        %v910 = vld [vmem:[#allocation2] sm:$0xff]
        %912 = vst [vmem:[#allocation1] ss:$4 sm:$0xff] %v910
        %v913 = vld.sshfl [vmem:[#allocation1] sm:$0xff pattern:$0x73625140]
        %v915 = vld.sshfl [vmem:[#allocation1 + $0x8] sm:$0xff pattern:$0x73625140]
        %v917 = vld.sshfl [vmem:[#allocation1 + $0x10] sm:$0xff pattern:$0x73625140]
        %v919 = vld.sshfl [vmem:[#allocation1 + $0x18] sm:$0xff pattern:$0x73625140]
        %921 = vrot.lane.b32.xlu0 %v913, 90
        %v922 = vpop.permute.xlu0 %921
        %923 = vrot.lane.b32.xlu0 %v915, 90
        %v924 = vpop.permute.xlu0 %923
        %925 = vrot.lane.b32.xlu0 %v917, 90
        %v926 = vpop.permute.xlu0 %925
        %927 = vrot.lane.b32.xlu0 %v919, 90
        %v928 = vpop.permute.xlu0 %927
        %vm929 = vcmask 736256
        %v930 = vsel %vm929, %v922, %v924
        %v931 = vsel %vm929, %v924, %v926
        %v932 = vsel %vm929, %v926, %v928
        %v934 = vsel %vm329, %v909, 0
        %v937 = vsel %vm291, %v930, 0
        %v940 = vsel %vm291, %v931, 0
        %v943 = vsel %vm291, %v932, 0
        %945 = vmatpush.bf16.msra.mxu0 0
        %946 = vmatpush.bf16.msra.mxu0 0
        %947 = vmatpush.bf16.msra.mxu0 0
        %948 = vmatpush.bf16.msra.mxu0 0
        %949 = vmatpush.bf16.msra.mxu0 0
        %950 = vmatpush.bf16.msra.mxu0 0
        %951 = vmatpush.bf16.msra.mxu0 0
        %952 = vmatpush.bf16.msra.mxu0 %v937
        %953 = vmatmul.bf16.gmra.mxu0 %v934
        %v954 = vpop.f32.mrf.mxu0
        %v955 = vadd.f32 0.0, %v954
        %v956 = vpop.f32.mrf.mxu0
        %957 = vdwg.mxu0
        %958 = vmatpush.bf16.msra.mxu0 0
        %959 = vmatpush.bf16.msra.mxu0 0
        %960 = vmatpush.bf16.msra.mxu0 0
        %961 = vmatpush.bf16.msra.mxu0 0
        %962 = vmatpush.bf16.msra.mxu0 0
        %963 = vmatpush.bf16.msra.mxu0 0
        %964 = vmatpush.bf16.msra.mxu0 0
        %965 = vmatpush.bf16.msra.mxu0 %v940
        %966 = vmatmul.bf16.gmra.mxu0 %v934
        %v967 = vpop.f32.mrf.mxu0
        %v968 = vadd.f32 0.0, %v967
        %v969 = vpop.f32.mrf.mxu0
        %970 = vdwg.mxu0
        %971 = vmatpush.bf16.msra.mxu0 0
        %972 = vmatpush.bf16.msra.mxu0 0
        %973 = vmatpush.bf16.msra.mxu0 0
        %974 = vmatpush.bf16.msra.mxu0 0
        %975 = vmatpush.bf16.msra.mxu0 0
        %976 = vmatpush.bf16.msra.mxu0 0
        %977 = vmatpush.bf16.msra.mxu0 0
        %978 = vmatpush.bf16.msra.mxu0 %v943
        %979 = vmatmul.bf16.gmra.mxu0 %v934
        %v980 = vpop.f32.mrf.mxu0
        %v981 = vadd.f32 0.0, %v980
        %v982 = vpop.f32.mrf.mxu0
        %983 = vdwg.mxu0
        %v984 = vadd.f32 %v905, %v955
        %v985 = vadd.f32 %v906, %v968
        %v986 = vadd.f32 %v907, %v981
        %v988 = vperm.slane %v199, 0
        %v989 = vperm.slane %v199, 1
        %v990 = vperm.slane %v199, 2
        %v994 = vmul.f32 %v984, %v988
        %v995 = vmul.f32 %v985, %v989
        %v996 = vmul.f32 %v986, %v990
        %v997 = vmul.f32 %v994, %v994
        %v998 = vmul.f32 %v995, %v995
        %v999 = vmul.f32 %v996, %v996
        %v1000 = vadd.f32 %v997, %v998
        %v1001 = vadd.f32 %v1000, %v999
        %1002 = vadd.xlane.f32.xlu0 %v1001
        %v1003 = vpop.xlane.xlu0 %1002
        %v1004 = vrsqrt.pop %v1003
        %v1005 = vmul.f32 %v1004, %v1003
        %v1006 = vmul.f32 %v1005, %v1004
        %v1007 = vmul.f32 0.5, %v1006
        %v1008 = vsub.f32 1.5, %v1007
        %v1009 = vmul.f32 %v1004, %v1008
        %v1010 = vmul.f32 %v1003, %v1009
        %vm1011 = vcmp.eq.f32.partialorder %v1003, inf
        %v1012 = vsel %vm1011, %v1003, %v1010
        %vm1013 = vcmp.eq.f32.partialorder %v1003, 0.0
        %v1014 = vand.u32 %v1003, 2147483648
        %v1015 = vsel %vm1013, %v1014, %v1012
        %v1016 = vmax.f32 %v1015, 1e-05
        %v1017 = vmax.f32 %v1016, -15.0
        %v1018 = vmin.f32 %v1017, 15.0
        %v1019 = vtanh.pop %v1018
        %v1020 = vrcp.pop %v1016
        %v1021 = vmul.f32 %v1019, %v1020
        %v1022 = vmul.f32 %v994, %v1021
        %v1023 = vmul.f32 %v995, %v1021
        %v1024 = vmul.f32 %v996, %v1021
        %v1025 = vld [vmem:[%s2] sm:$0xff]
        %v1026 = vmul.f32 %v1025, %v1025
        %vm1027 = vcmask 7168
        %v1028 = vsel %vm1027, %v1026, 0.0
        %1029 = vadd.xlane.f32.xlu0 %v1028
        %v1030 = vpop.xlane.xlu0 %1029
        %v1031 = vrot.slane %v1030, 4
        %v1032 = vadd.f32 %v1030, %v1031
        %v1033 = vrot.slane %v1032, 2
        %v1034 = vadd.f32 %v1032, %v1033
        %v1035 = vrot.slane %v1034, 1
        %v1036 = vadd.f32 %v1034, %v1035
        %s1037 = vtos %v1036
        %v1038 = vstv %s1037
        %v1039 = vrsqrt.pop %v1038
        %v1040 = vmul.f32 %v1039, %v1038
        %v1041 = vmul.f32 %v1040, %v1039
        %v1042 = vmul.f32 0.5, %v1041
        %v1043 = vsub.f32 1.5, %v1042
        %v1044 = vmul.f32 %v1039, %v1043
        %v1045 = vmul.f32 %v1038, %v1044
        %vm1046 = vcmp.eq.f32.partialorder %v1038, inf
        %v1047 = vsel %vm1046, %v1038, %v1045
        %vm1048 = vcmp.eq.f32.partialorder %v1038, 0.0
        %v1049 = vand.u32 %v1038, 2147483648
        %v1050 = vsel %vm1048, %v1049, %v1047
        %s1051 = vtos %v1050
        %s1052 = smax.f32 %s1051, 1e-05
        %s1053 = smax.f32 %s1052, -15.0
        %s1054 = smin.f32 %s1053, 15.0
        %v1055 = vstv %s1054
        %v1056 = vtanh.pop %v1055
        %s1057 = vtos %v1056
        %v1058 = vstv %s1052
        %v1059 = vrcp.pop %v1058
        %v1060 = vmul.f32 %v1058, %v1059
        %v1061 = vsub.f32 1.0, %v1060
        %v1062 = vmul.f32 %v1059, %v1061
        %v1063 = vadd.f32 %v1059, %v1062
        %vm1064 = vweird.f32 %v1058
        %vm1065 = vweird.f32 %v1059
        %vm1066 = vmor %vm1064, %vm1065
        %v1067 = vsel %vm1066, %v1059, %v1063
        %v1068 = vand.u32 2147483647, %v1058
        %vm1069 = vcmp.eq.f32.partialorder %v1068, 8.507059e+37
        %v1070 = vand.u32 %v1058, 2147483648
        %v1071 = vor.u32 1.1754944e-38, %v1070
        %v1072 = vsel %vm1069, %v1071, %v1067
        %s1073 = vtos %v1072
        %s1074 = smul.f32 %s1057, %s1073
        %v1075 = vstv %s1074
        %v1076 = vmul.f32 %v1075, %v1025
        %v1077 = vmul.f32 %v1022, %v1022
        %v1078 = vmul.f32 %v1023, %v1023
        %v1079 = vmul.f32 %v1024, %v1024
        %v1080 = vadd.f32 %v1077, %v1078
        %v1081 = vadd.f32 %v1080, %v1079
        %1082 = vadd.xlane.f32.xlu0 %v1081
        %v1083 = vpop.xlane.xlu0 %1082
        %v1084 = vadd.f32 %v1022, %v1023
        %v1085 = vadd.f32 %v1084, %v1024
        %1086 = vadd.xlane.f32.xlu0 %v1085
        %v1087 = vpop.xlane.xlu0 %1086
        %v1088 = vmul.f32 %v1076, %v1087
        %v1089 = vmul.f32 %v1076, 256.0
        %v1090 = vmul.f32 %v1089, %v1076
        %v1091 = vmul.f32 %v1088, 2.0
        %v1092 = vadd.f32 %v1091, 1.0
        %v1093 = vadd.f32 %v1092, %v1090
        %v1094 = vsub.f32 1.0, %v1083
        %v1095 = vmul.f32 %v1094, %v1076
        %1097 = vset.pattern.permute.xlu0 0
        %1098 = vperm.xlu0 %1097, %v1093
        %v1099 = vpop.permute.xlu0 %1098
        %v1101 = vmul.f32 %v1099, %v1022
        %v1102 = vmul.f32 %v1099, %v1023
        %v1103 = vmul.f32 %v1099, %v1024
        %1105 = vset.pattern.permute.xlu0 0
        %1106 = vperm.xlu0 %1105, %v1095
        %v1107 = vpop.permute.xlu0 %1106
        %v1109 = vmul.f32 %v1107, %v988
        %v1110 = vmul.f32 %v1107, %v989
        %v1111 = vmul.f32 %v1107, %v990
        %v1112 = vadd.f32 %v1101, %v1109
        %v1113 = vadd.f32 %v1102, %v1110
        %v1114 = vadd.f32 %v1103, %v1111
        %v1115 = vmul.f32 %v1083, %v1090
        %v1116 = vadd.f32 %v1092, %v1115
        %v1117 = vadd.f32 %v1116, 1e-05
        %v1118 = vrcp.pop %v1117
        %v1119 = vmul.f32 %v1117, %v1118
        %v1120 = vsub.f32 1.0, %v1119
        %v1121 = vmul.f32 %v1118, %v1120
        %v1122 = vadd.f32 %v1118, %v1121
        %vm1123 = vweird.f32 %v1117
        %vm1124 = vweird.f32 %v1118
        %vm1125 = vmor %vm1123, %vm1124
        %v1126 = vsel %vm1125, %v1118, %v1122
        %v1127 = vand.u32 2147483647, %v1117
        %vm1128 = vcmp.eq.f32.partialorder %v1127, 8.507059e+37
        %v1129 = vand.u32 %v1117, 2147483648
        %v1130 = vor.u32 1.1754944e-38, %v1129
        %v1131 = vsel %vm1128, %v1130, %v1126
        %v1132 = vmul.f32 1.0, %v1131
        %1134 = vset.pattern.permute.xlu0 0
        %1135 = vperm.xlu0 %1134, %v1132
        %v1136 = vpop.permute.xlu0 %1135
        %v1138 = vmul.f32 %v1112, %v1136
        %v1139 = vmul.f32 %v1113, %v1136
        %v1140 = vmul.f32 %v1114, %v1136
        %v1141 = vmul.f32 %v1138, %v1138
        %v1142 = vmul.f32 %v1139, %v1139
        %v1143 = vmul.f32 %v1140, %v1140
        %v1144 = vadd.f32 %v1141, %v1142
        %v1145 = vadd.f32 %v1144, %v1143
        %1146 = vadd.xlane.f32.xlu0 %v1145
        %v1147 = vpop.xlane.xlu0 %1146
        %v1148 = vrsqrt.pop %v1147
        %v1149 = vmul.f32 %v1148, %v1147
        %v1150 = vmul.f32 %v1149, %v1148
        %v1151 = vmul.f32 0.5, %v1150
        %v1152 = vsub.f32 1.5, %v1151
        %v1153 = vmul.f32 %v1148, %v1152
        %v1154 = vmul.f32 %v1147, %v1153
        %vm1155 = vcmp.eq.f32.partialorder %v1147, inf
        %v1156 = vsel %vm1155, %v1147, %v1154
        %vm1157 = vcmp.eq.f32.partialorder %v1147, 0.0
        %v1158 = vand.u32 %v1147, 2147483648
        %v1159 = vsel %vm1157, %v1158, %v1156
        %v1160 = vmax.f32 %v1159, 1e-05
        %vm1161 = vcmp.gt.f32.partialorder %v1160, 0.999
        %v1162 = vrcp.pop %v1160
        %v1163 = vmul.f32 %v1160, %v1162
        %v1164 = vsub.f32 1.0, %v1163
        %v1165 = vmul.f32 %v1162, %v1164
        %v1166 = vadd.f32 %v1162, %v1165
        %vm1167 = vweird.f32 %v1160
        %vm1168 = vweird.f32 %v1162
        %vm1169 = vmor %vm1167, %vm1168
        %v1170 = vsel %vm1169, %v1162, %v1166
        %v1171 = vand.u32 2147483647, %v1160
        %vm1172 = vcmp.eq.f32.partialorder %v1171, 8.507059e+37
        %v1173 = vand.u32 %v1160, 2147483648
        %v1174 = vor.u32 1.1754944e-38, %v1173
        %v1175 = vsel %vm1172, %v1174, %v1170
        %v1176 = vmul.f32 0.999, %v1175
        %v1177 = vsel %vm1161, %v1176, 1.0
        %v1178 = vmul.f32 %v1138, %v1177
        %v1179 = vmul.f32 %v1139, %v1177
        %v1180 = vmul.f32 %v1140, %v1177
        %1181 = vst [vmem:[%s190] sm:$0xff] %v1178
        %1182 = vst [vmem:[%s190 + $0x8] sm:$0xff] %v1179
        %1183 = vst [vmem:[%s190 + $0x10] sm:$0xff] %v1180
        %s1184 = sand.u32 %s115, 1
        %s1185 = scalar_lea.sflag [#allocation4], %s1184
        %s1186 = sand.u32 %s115, 1
        %s1187 = smul.addr %s1186, 24
        %s1188 = scalar_lea.vmem [#allocation3], %s1187
        // Predicated region
        $region37: #{tpu_custom_call.1} parent=35 // pred_check
          %p1189 = pneg %p125
        $region38: #{tpu_custom_call.1} parent=35 // pred_check_branch
          %1191 = sbr.rel (%p1189) target = $region40
        $region39: #{tpu_custom_call.1} parent=35 // pred_region
          %1193 = vsyncadd %s1185, 0
          %s1194 = smul.addr %s18, 3
          %s1195 = smul.addr %s1194, 8
          %s1196 = scalar_lea.hbm %s4, %s1195
          %s1198 = sshll.u32 %s1188, 4
          %s1199 = int_to_ptr.vmem [resolvable:$true] %s1198
          %s1200 = sshll.u32 %s1196, 4
          %s1201 = int_to_ptr.hbm [resolvable:$true] %s1200
          %1203 = dma.vmem_to_hbm [thread:$0]  %s1199, 384, %s1201, %s1185
        $region40: #{tpu_custom_call.1} parent=35 // pred_fallthru
          _
      $region36: #{tpu_custom_call.1} parent=5 // pred_fallthru
        _
      %p1204 = scmp.le.s32.totalorder 2, %s13
      // Predicated region
      $region41: #{tpu_custom_call.1} parent=5 // pred_check
        %p1205 = pneg %p1204
      $region42: #{tpu_custom_call.1} parent=5 // pred_check_branch
        %1207 = sbr.rel (%p1205) target = $region44
      $region43: #{tpu_custom_call.1} parent=5 // pred_region
        %s1208 = ssub.s32 %s13, 2
        // Predicated region
        $region45: #{tpu_custom_call.1} parent=43 // pred_check
          %p1209 = pneg %p131
        $region46: #{tpu_custom_call.1} parent=43 // pred_check_branch
          %1211 = sbr.rel (%p1209) target = $region48
        $region47: #{tpu_custom_call.1} parent=43 // pred_region
          %s1212 = sand.u32 %s116, 1
          %s1213 = scalar_lea.sflag [#allocation4], %s1212
          %s1214 = sand.u32 %s116, 1
          %s1215 = smul.addr %s1214, 24
          %s1216 = scalar_lea.vmem [#allocation3], %s1215
          %1218 = dma.done %s1213, 384
        $region48: #{tpu_custom_call.1} parent=43 // pred_fallthru
          _
      $region44: #{tpu_custom_call.1} parent=5 // pred_fallthru
        _
    $region6: #{tpu_custom_call.1} parent=1 // loop_footer
      %s17 = sadd.s32 1, %s13
    $region7: #{tpu_custom_call.1} parent=1 // loop_footer_branch
      %12 = sbr.rel target = $region3
    $region8: #{tpu_custom_call.1} parent=1 // loop_exit
      _
    %1219 = vsyncpa [#allocation4], 1
    %s1220 = scalar_lea.sflag [#allocation4], 1
    %1221 = vsyncpa %s1220, 1

</llo_original>
